<compile_context>
chip_gen: v7x
topology: tpu7x:2x2x1
jax: 0.10.0
libtpu: 0.0.40
codegen_flags: <defaults>
</compile_context>

<pallas_src>
import jax
import jax.numpy as jnp
from jax.experimental import pallas as pl
from jax.experimental.pallas import tpu as pltpu  # noqa: F401 (TPU backend)

# -------------------- reduced, self-consistent config ----------------------
N_BATCH = 2                      # torch batch
C_IN    = 4                      # torch 36
C1, C2, C3 = 8, 16, 32           # torch 72, 144, 288
HEIGHT  = 2                      # height (untouched by the [1,K] convs)
KSIZE   = 3                      # torch kernel_size = 15
POOL    = 2                      # torch mean_pool = 3
WINDOW  = 32                     # torch crop width = 500
N_ITERS = WINDOW + 1             # torch 501 (loop count == final divisor)
W_TOTAL = 2 * WINDOW + 1         # torch 1001
LAST_OFF = N_ITERS               # final torch crop offset: x[..., i:i+WINDOW], i = N_ITERS

W1  = WINDOW - KSIZE + 1         # 30
W1P = W1 // POOL                 # 15
W2  = W1P - KSIZE + 1            # 13
W2P = W2 // POOL                 # 6
W3  = W2P - KSIZE + 1            # 4
W3P = W3 // POOL                 # 2
FEAT = C3 * HEIGHT * W3P         # 128 (== fc in_features == outputSize)
OUT_SIZE = FEAT
HB = HEIGHT * N_BATCH

assert LAST_OFF + WINDOW <= W_TOTAL
assert N_ITERS > 1               # surviving torch iteration has i > 1 (so `+= out` applies)
assert FEAT == OUT_SIZE          # required by torch's `prediction += out`


# ------------------------------ kernel --------------------------------------
def _arm_kernel(x_ref,
                w1_ref, b1_ref, g1_ref, be1_ref,
                w2_ref, b2_ref, g2_ref, be2_ref,
                w3_ref, b3_ref, g3_ref, be3_ref,
                fcw_ref, fcb_ref,
                pred_ref):
    # Final crop only — the single crop that can influence the torch output.
    x = x_ref[:, LAST_OFF:LAST_OFF + WINDOW, :]          # (HB, WINDOW, C_IN)

    def conv_bn_elu_pool(y3, w_ref, b_ref, g_ref, be_ref):
        # y3: (HB, Win, Cin) f32;  w_ref: host-im2col'ed (KSIZE*Cin, Cout)
        hb, win, cin = y3.shape
        w = w_ref[...]
        wout = win - KSIZE + 1
        wp = wout // POOL
        # --- im2col: K shifted slices concatenated along lanes ---------------
        cat3 = jnp.concatenate([y3[:, k:k + wout, :] for k in range(KSIZE)],
                               axis=-1)                   # (HB, Wout, K*Cin)
        # --- collapse the sample dim into sublanes -> ONE 2-D MXU matmul -----
        cat2 = jnp.concatenate([cat3[h] for h in range(hb)],
                               axis=0)                    # (HB*Wout, K*Cin)
        z = jnp.dot(cat2, w, preferred_element_type=jnp.float32) + b_ref[...]
        # --- BatchNorm2d, training-mode batch stats over all (N,H,W) rows ----
        inv_cnt = 1.0 / float(hb * wout)
        mean = jnp.sum(z, axis=0, keepdims=True) * inv_cnt          # (1, Cout)
        d = z - mean
        var = jnp.sum(d * d, axis=0, keepdims=True) * inv_cnt       # biased, as torch
        z = d * jax.lax.rsqrt(var + 1e-5) * g_ref[...] + be_ref[...]
        # --- ELU(alpha=1); exp argument clamped to <= 0 for safety -----------
        z = jnp.where(z > 0.0, z, jnp.exp(jnp.minimum(z, 0.0)) - 1.0)
        # --- back to (HB, Wout, C), then AvgPool2d([1,POOL]) as VPU adds ------
        z3 = jnp.concatenate([z[h * wout:(h + 1) * wout][None] for h in range(hb)],
                             axis=0)                      # (HB, Wout, Cout)
        return jnp.concatenate(
            [sum(z3[:, POOL * p + j:POOL * p + j + 1, :] for j in range(POOL))
             * (1.0 / POOL)
             for p in range(wp)],
            axis=1)                                       # (HB, Wp, Cout) — floor drop

    y = conv_bn_elu_pool(x, w1_ref, b1_ref, g1_ref, be1_ref)   # (HB, W1P, C1)
    y = conv_bn_elu_pool(y, w2_ref, b2_ref, g2_ref, be2_ref)   # (HB, W2P, C2)
    y = conv_bn_elu_pool(y, w3_ref, b3_ref, g3_ref, be3_ref)   # (HB, W3P, C3)

    # Flatten in kernel order (h, w, c) by lane concatenation -> (N_BATCH, FEAT).
    lhs = jnp.concatenate(
        [y[h * N_BATCH:(h + 1) * N_BATCH, w, :]
         for h in range(HEIGHT) for w in range(W3P)],
        axis=-1)                                          # (N_BATCH, 128)

    # fc, the last-iteration `prediction += out` (folded as a permutation into
    # the fc matrix), and the final 1/N_ITERS scale are all pre-combined
    # host-side in fcw_ref / fcb_ref: one matmul + one dense store.
    pred_ref[...] = jnp.dot(lhs, fcw_ref[...],
                            preferred_element_type=jnp.float32) + fcb_ref[...]


# ------------------------- single fused pallas_call -------------------------
# No grid: everything (input ~4 KB + weights ~80 KB) fits in VMEM as whole
# arrays, the kernel body runs exactly once, and the only output is the
# lane-dense (N_BATCH, OUT_SIZE) prediction.
_arm_call = pl.pallas_call(
    _arm_kernel,
    out_shape=jax.ShapeDtypeStruct((N_BATCH, OUT_SIZE), jnp.float32),
)


# ------------------------------ parameters ----------------------------------
def init_params(key):
    ks = jax.random.split(key, 14)

    def conv_w(k, cin, cout):
        # host im2col layout: row = tap*cin + ci  (matches the kernel's lane concat)
        w = jax.random.normal(k, (KSIZE, cin, cout), jnp.float32) / jnp.sqrt(cin * KSIZE)
        return w.reshape(KSIZE * cin, cout)

    def vec(k, c, base=0.0):
        return base + 0.1 * jax.random.normal(k, (1, c), jnp.float32)

    w1 = conv_w(ks[0], C_IN, C1); b1 = vec(ks[1], C1); g1 = vec(ks[2], C1, 1.0); be1 = vec(ks[3], C1)
    w2 = conv_w(ks[4], C1, C2);   b2 = vec(ks[5], C2); g2 = vec(ks[6], C2, 1.0); be2 = vec(ks[7], C2)
    w3 = conv_w(ks[8], C2, C3);   b3 = vec(ks[9], C3); g3 = vec(ks[10], C3, 1.0); be3 = vec(ks[11], C3)

    # fc weight in torch convention (out, C3, H, W3P); rows reordered to the
    # kernel flatten order (h, w, c), columns stay torch output neurons.
    fcw_torch = jax.random.normal(ks[12], (OUT_SIZE, C3, HEIGHT, W3P), jnp.float32) / jnp.sqrt(FEAT)
    fcw_mat = jnp.transpose(fcw_torch, (2, 3, 1, 0)).reshape(FEAT, OUT_SIZE)
    fcb = 0.1 * jax.random.normal(ks[13], (1, OUT_SIZE), jnp.float32)

    # Permutation: kernel flatten order (h,w,c) -> torch flatten order
    # (c*H*W3P + h*W3P + w).  Adding it to the fc matrix realizes the torch
    # `prediction += out` of the surviving (last, i > 1) iteration.
    eye_perm = jnp.transpose(
        jnp.eye(FEAT, dtype=jnp.float32).reshape(C3, HEIGHT, W3P, FEAT),
        (1, 2, 0, 3)).reshape(FEAT, FEAT)

    # Torch: only the LAST iteration's `prediction = fc(out); prediction += out`
    # survives, then `prediction /= N_ITERS`.  Fold all constants host-side.
    fc_final = (fcw_mat + eye_perm) * (1.0 / N_ITERS)
    fcb_final = fcb * (1.0 / N_ITERS)

    return (w1, b1, g1, be1,
            w2, b2, g2, be2,
            w3, b3, g3, be3,
            fc_final, fcb_final)


# ------------------------------ forward -------------------------------------
def _arm_forward(x, params):
    # x is PyTorch-style NCHW: (N_BATCH, C_IN, HEIGHT, W_TOTAL)
    # -> kernel layout (HB, W, C) with row = h*N_BATCH + n.
    xk = jnp.transpose(x, (2, 0, 3, 1)).reshape(HB, W_TOTAL, C_IN)
    return _arm_call(xk, *params)


arm_forward = jax.jit(_arm_forward)


if __name__ == "__main__":
    key = jax.random.PRNGKey(0)
    kx, kp = jax.random.split(key)
    x = jax.random.normal(kx, (N_BATCH, C_IN, HEIGHT, W_TOTAL), jnp.float32)
    params = init_params(kp)

    out = arm_forward(x, params)
    out = jax.block_until_ready(out)

    assert out.shape == (N_BATCH, OUT_SIZE), out.shape
    assert bool(jnp.all(jnp.isfinite(out)))
    print("KERNEL_OK")
</pallas_src>

<mosaic_0001>
module attributes {stable_mosaic.version = 11 : i64} {
  func.func @_arm_kernel(%arg0: memref<4x65x4xf32, #tpu.memory_space<vmem>>, %arg1: memref<12x8xf32, #tpu.memory_space<vmem>>, %arg2: memref<1x8xf32, #tpu.memory_space<vmem>>, %arg3: memref<1x8xf32, #tpu.memory_space<vmem>>, %arg4: memref<1x8xf32, #tpu.memory_space<vmem>>, %arg5: memref<24x16xf32, #tpu.memory_space<vmem>>, %arg6: memref<1x16xf32, #tpu.memory_space<vmem>>, %arg7: memref<1x16xf32, #tpu.memory_space<vmem>>, %arg8: memref<1x16xf32, #tpu.memory_space<vmem>>, %arg9: memref<48x32xf32, #tpu.memory_space<vmem>>, %arg10: memref<1x32xf32, #tpu.memory_space<vmem>>, %arg11: memref<1x32xf32, #tpu.memory_space<vmem>>, %arg12: memref<1x32xf32, #tpu.memory_space<vmem>>, %arg13: memref<128x128xf32, #tpu.memory_space<vmem>>, %arg14: memref<1x128xf32, #tpu.memory_space<vmem>>, %arg15: memref<2x128xf32, #tpu.memory_space<vmem>>) attributes {dimension_semantics = [], scalar_prefetch = 0 : i64, scratch_operands = 0 : i64, tpu.core_type = #tpu.core_type<tc>} {
    %c0 = arith.constant 0 : index
    %c33 = arith.constant 33 : index
    %c0_0 = arith.constant 0 : index
    %0 = vector.load %arg0[%c0, %c33, %c0_0] : memref<4x65x4xf32, #tpu.memory_space<vmem>>, vector<4x32x4xf32>
    %c0_1 = arith.constant 0 : index
    %c0_2 = arith.constant 0 : index
    %1 = vector.load %arg1[%c0_1, %c0_2] : memref<12x8xf32, #tpu.memory_space<vmem>>, vector<12x8xf32>
    %2 = vector.extract_strided_slice %0 {offsets = [0, 0, 0], sizes = [4, 30, 4], strides = [1, 1, 1]} : vector<4x32x4xf32> to vector<4x30x4xf32>
    %3 = vector.extract_strided_slice %0 {offsets = [0, 1, 0], sizes = [4, 30, 4], strides = [1, 1, 1]} : vector<4x32x4xf32> to vector<4x30x4xf32>
    %4 = vector.extract_strided_slice %0 {offsets = [0, 2, 0], sizes = [4, 30, 4], strides = [1, 1, 1]} : vector<4x32x4xf32> to vector<4x30x4xf32>
    %5 = tpu.concatenate %2, %3, %4 in 2 : vector<4x30x4xf32>, vector<4x30x4xf32>, vector<4x30x4xf32> -> vector<4x30x12xf32>
    %6 = vector.extract_strided_slice %5 {offsets = [0, 0, 0], sizes = [1, 30, 12], strides = [1, 1, 1]} : vector<4x30x12xf32> to vector<1x30x12xf32>
    %7 = vector.shape_cast %6 : vector<1x30x12xf32> to vector<30x12xf32>
    %8 = vector.extract_strided_slice %5 {offsets = [1, 0, 0], sizes = [1, 30, 12], strides = [1, 1, 1]} : vector<4x30x12xf32> to vector<1x30x12xf32>
    %9 = vector.shape_cast %8 : vector<1x30x12xf32> to vector<30x12xf32>
    %10 = vector.extract_strided_slice %5 {offsets = [2, 0, 0], sizes = [1, 30, 12], strides = [1, 1, 1]} : vector<4x30x12xf32> to vector<1x30x12xf32>
    %11 = vector.shape_cast %10 : vector<1x30x12xf32> to vector<30x12xf32>
    %12 = vector.extract_strided_slice %5 {offsets = [3, 0, 0], sizes = [1, 30, 12], strides = [1, 1, 1]} : vector<4x30x12xf32> to vector<1x30x12xf32>
    %13 = vector.shape_cast %12 : vector<1x30x12xf32> to vector<30x12xf32>
    %14 = tpu.concatenate %7, %9, %11, %13 in 0 : vector<30x12xf32>, vector<30x12xf32>, vector<30x12xf32>, vector<30x12xf32> -> vector<120x12xf32>
    %cst = arith.constant dense<0.000000e+00> : vector<120x8xf32>
    %15 = tpu.matmul %14, %1, %cst {dimension_numbers = #tpu.dot_dimension_numbers<[1], [0], [0], [1], [0, 0, 1, 1], [], []>} : vector<120x12xf32>, vector<12x8xf32>, vector<120x8xf32> -> vector<120x8xf32>
    %c0_3 = arith.constant 0 : index
    %c0_4 = arith.constant 0 : index
    %16 = vector.load %arg2[%c0_3, %c0_4] : memref<1x8xf32, #tpu.memory_space<vmem>>, vector<1x8xf32>
    %17 = vector.broadcast %16 : vector<1x8xf32> to vector<120x8xf32>
    %18 = arith.addf %15, %17 : vector<120x8xf32>
    %cst_5 = arith.constant dense<0.000000e+00> : vector<8xf32>
    %19 = vector.multi_reduction <add>, %18, %cst_5 [0] : vector<120x8xf32> to vector<8xf32>
    %20 = vector.shape_cast %19 : vector<8xf32> to vector<1x8xf32>
    %cst_6 = arith.constant 0.00833333377 : f32
    %21 = vector.broadcast %cst_6 : f32 to vector<1x8xf32>
    %22 = arith.mulf %20, %21 : vector<1x8xf32>
    %23 = vector.broadcast %22 : vector<1x8xf32> to vector<120x8xf32>
    %24 = arith.subf %18, %23 : vector<120x8xf32>
    %25 = arith.mulf %24, %24 : vector<120x8xf32>
    %cst_7 = arith.constant dense<0.000000e+00> : vector<8xf32>
    %26 = vector.multi_reduction <add>, %25, %cst_7 [0] : vector<120x8xf32> to vector<8xf32>
    %27 = vector.shape_cast %26 : vector<8xf32> to vector<1x8xf32>
    %cst_8 = arith.constant 0.00833333377 : f32
    %28 = vector.broadcast %cst_8 : f32 to vector<1x8xf32>
    %29 = arith.mulf %27, %28 : vector<1x8xf32>
    %cst_9 = arith.constant 9.99999974E-6 : f32
    %30 = vector.broadcast %cst_9 : f32 to vector<1x8xf32>
    %31 = arith.addf %29, %30 : vector<1x8xf32>
    %32 = math.rsqrt %31 : vector<1x8xf32>
    %33 = vector.broadcast %32 : vector<1x8xf32> to vector<120x8xf32>
    %34 = arith.mulf %24, %33 : vector<120x8xf32>
    %c0_10 = arith.constant 0 : index
    %c0_11 = arith.constant 0 : index
    %35 = vector.load %arg3[%c0_10, %c0_11] : memref<1x8xf32, #tpu.memory_space<vmem>>, vector<1x8xf32>
    %36 = vector.broadcast %35 : vector<1x8xf32> to vector<120x8xf32>
    %37 = arith.mulf %34, %36 : vector<120x8xf32>
    %c0_12 = arith.constant 0 : index
    %c0_13 = arith.constant 0 : index
    %38 = vector.load %arg4[%c0_12, %c0_13] : memref<1x8xf32, #tpu.memory_space<vmem>>, vector<1x8xf32>
    %39 = vector.broadcast %38 : vector<1x8xf32> to vector<120x8xf32>
    %40 = arith.addf %37, %39 : vector<120x8xf32>
    %cst_14 = arith.constant 0.000000e+00 : f32
    %41 = vector.broadcast %cst_14 : f32 to vector<120x8xf32>
    %42 = arith.cmpf ogt, %40, %41 : vector<120x8xf32>
    %cst_15 = arith.constant 0.000000e+00 : f32
    %43 = vector.broadcast %cst_15 : f32 to vector<120x8xf32>
    %44 = arith.minimumf %40, %43 : vector<120x8xf32>
    %45 = math.exp %44 : vector<120x8xf32>
    %cst_16 = arith.constant 1.000000e+00 : f32
    %46 = vector.broadcast %cst_16 : f32 to vector<120x8xf32>
    %47 = arith.subf %45, %46 : vector<120x8xf32>
    %48 = arith.select %42, %40, %47 : vector<120x8xi1>, vector<120x8xf32>
    %49 = vector.extract_strided_slice %48 {offsets = [0, 0], sizes = [30, 8], strides = [1, 1]} : vector<120x8xf32> to vector<30x8xf32>
    %50 = vector.shape_cast %49 : vector<30x8xf32> to vector<1x30x8xf32>
    %51 = vector.extract_strided_slice %48 {offsets = [30, 0], sizes = [30, 8], strides = [1, 1]} : vector<120x8xf32> to vector<30x8xf32>
    %52 = vector.shape_cast %51 : vector<30x8xf32> to vector<1x30x8xf32>
    %53 = vector.extract_strided_slice %48 {offsets = [60, 0], sizes = [30, 8], strides = [1, 1]} : vector<120x8xf32> to vector<30x8xf32>
    %54 = vector.shape_cast %53 : vector<30x8xf32> to vector<1x30x8xf32>
    %55 = vector.extract_strided_slice %48 {offsets = [90, 0], sizes = [30, 8], strides = [1, 1]} : vector<120x8xf32> to vector<30x8xf32>
    %56 = vector.shape_cast %55 : vector<30x8xf32> to vector<1x30x8xf32>
    %57 = tpu.concatenate %50, %52, %54, %56 in 0 : vector<1x30x8xf32>, vector<1x30x8xf32>, vector<1x30x8xf32>, vector<1x30x8xf32> -> vector<4x30x8xf32>
    %58 = vector.extract_strided_slice %57 {offsets = [0, 0, 0], sizes = [4, 1, 8], strides = [1, 1, 1]} : vector<4x30x8xf32> to vector<4x1x8xf32>
    %cst_17 = arith.constant 0.000000e+00 : f32
    %59 = vector.broadcast %cst_17 : f32 to vector<4x1x8xf32>
    %60 = arith.addf %59, %58 : vector<4x1x8xf32>
    %61 = vector.extract_strided_slice %57 {offsets = [0, 1, 0], sizes = [4, 1, 8], strides = [1, 1, 1]} : vector<4x30x8xf32> to vector<4x1x8xf32>
    %62 = arith.addf %60, %61 : vector<4x1x8xf32>
    %cst_18 = arith.constant 5.000000e-01 : f32
    %63 = vector.broadcast %cst_18 : f32 to vector<4x1x8xf32>
    %64 = arith.mulf %62, %63 : vector<4x1x8xf32>
    %65 = vector.extract_strided_slice %57 {offsets = [0, 2, 0], sizes = [4, 1, 8], strides = [1, 1, 1]} : vector<4x30x8xf32> to vector<4x1x8xf32>
    %cst_19 = arith.constant 0.000000e+00 : f32
    %66 = vector.broadcast %cst_19 : f32 to vector<4x1x8xf32>
    %67 = arith.addf %66, %65 : vector<4x1x8xf32>
    %68 = vector.extract_strided_slice %57 {offsets = [0, 3, 0], sizes = [4, 1, 8], strides = [1, 1, 1]} : vector<4x30x8xf32> to vector<4x1x8xf32>
    %69 = arith.addf %67, %68 : vector<4x1x8xf32>
    %cst_20 = arith.constant 5.000000e-01 : f32
    %70 = vector.broadcast %cst_20 : f32 to vector<4x1x8xf32>
    %71 = arith.mulf %69, %70 : vector<4x1x8xf32>
    %72 = vector.extract_strided_slice %57 {offsets = [0, 4, 0], sizes = [4, 1, 8], strides = [1, 1, 1]} : vector<4x30x8xf32> to vector<4x1x8xf32>
    %cst_21 = arith.constant 0.000000e+00 : f32
    %73 = vector.broadcast %cst_21 : f32 to vector<4x1x8xf32>
    %74 = arith.addf %73, %72 : vector<4x1x8xf32>
    %75 = vector.extract_strided_slice %57 {offsets = [0, 5, 0], sizes = [4, 1, 8], strides = [1, 1, 1]} : vector<4x30x8xf32> to vector<4x1x8xf32>
    %76 = arith.addf %74, %75 : vector<4x1x8xf32>
    %cst_22 = arith.constant 5.000000e-01 : f32
    %77 = vector.broadcast %cst_22 : f32 to vector<4x1x8xf32>
    %78 = arith.mulf %76, %77 : vector<4x1x8xf32>
    %79 = vector.extract_strided_slice %57 {offsets = [0, 6, 0], sizes = [4, 1, 8], strides = [1, 1, 1]} : vector<4x30x8xf32> to vector<4x1x8xf32>
    %cst_23 = arith.constant 0.000000e+00 : f32
    %80 = vector.broadcast %cst_23 : f32 to vector<4x1x8xf32>
    %81 = arith.addf %80, %79 : vector<4x1x8xf32>
    %82 = vector.extract_strided_slice %57 {offsets = [0, 7, 0], sizes = [4, 1, 8], strides = [1, 1, 1]} : vector<4x30x8xf32> to vector<4x1x8xf32>
    %83 = arith.addf %81, %82 : vector<4x1x8xf32>
    %cst_24 = arith.constant 5.000000e-01 : f32
    %84 = vector.broadcast %cst_24 : f32 to vector<4x1x8xf32>
    %85 = arith.mulf %83, %84 : vector<4x1x8xf32>
    %86 = vector.extract_strided_slice %57 {offsets = [0, 8, 0], sizes = [4, 1, 8], strides = [1, 1, 1]} : vector<4x30x8xf32> to vector<4x1x8xf32>
    %cst_25 = arith.constant 0.000000e+00 : f32
    %87 = vector.broadcast %cst_25 : f32 to vector<4x1x8xf32>
    %88 = arith.addf %87, %86 : vector<4x1x8xf32>
    %89 = vector.extract_strided_slice %57 {offsets = [0, 9, 0], sizes = [4, 1, 8], strides = [1, 1, 1]} : vector<4x30x8xf32> to vector<4x1x8xf32>
    %90 = arith.addf %88, %89 : vector<4x1x8xf32>
    %cst_26 = arith.constant 5.000000e-01 : f32
    %91 = vector.broadcast %cst_26 : f32 to vector<4x1x8xf32>
    %92 = arith.mulf %90, %91 : vector<4x1x8xf32>
    %93 = vector.extract_strided_slice %57 {offsets = [0, 10, 0], sizes = [4, 1, 8], strides = [1, 1, 1]} : vector<4x30x8xf32> to vector<4x1x8xf32>
    %cst_27 = arith.constant 0.000000e+00 : f32
    %94 = vector.broadcast %cst_27 : f32 to vector<4x1x8xf32>
    %95 = arith.addf %94, %93 : vector<4x1x8xf32>
    %96 = vector.extract_strided_slice %57 {offsets = [0, 11, 0], sizes = [4, 1, 8], strides = [1, 1, 1]} : vector<4x30x8xf32> to vector<4x1x8xf32>
    %97 = arith.addf %95, %96 : vector<4x1x8xf32>
    %cst_28 = arith.constant 5.000000e-01 : f32
    %98 = vector.broadcast %cst_28 : f32 to vector<4x1x8xf32>
    %99 = arith.mulf %97, %98 : vector<4x1x8xf32>
    %100 = vector.extract_strided_slice %57 {offsets = [0, 12, 0], sizes = [4, 1, 8], strides = [1, 1, 1]} : vector<4x30x8xf32> to vector<4x1x8xf32>
    %cst_29 = arith.constant 0.000000e+00 : f32
    %101 = vector.broadcast %cst_29 : f32 to vector<4x1x8xf32>
    %102 = arith.addf %101, %100 : vector<4x1x8xf32>
    %103 = vector.extract_strided_slice %57 {offsets = [0, 13, 0], sizes = [4, 1, 8], strides = [1, 1, 1]} : vector<4x30x8xf32> to vector<4x1x8xf32>
    %104 = arith.addf %102, %103 : vector<4x1x8xf32>
    %cst_30 = arith.constant 5.000000e-01 : f32
    %105 = vector.broadcast %cst_30 : f32 to vector<4x1x8xf32>
    %106 = arith.mulf %104, %105 : vector<4x1x8xf32>
    %107 = vector.extract_strided_slice %57 {offsets = [0, 14, 0], sizes = [4, 1, 8], strides = [1, 1, 1]} : vector<4x30x8xf32> to vector<4x1x8xf32>
    %cst_31 = arith.constant 0.000000e+00 : f32
    %108 = vector.broadcast %cst_31 : f32 to vector<4x1x8xf32>
    %109 = arith.addf %108, %107 : vector<4x1x8xf32>
    %110 = vector.extract_strided_slice %57 {offsets = [0, 15, 0], sizes = [4, 1, 8], strides = [1, 1, 1]} : vector<4x30x8xf32> to vector<4x1x8xf32>
    %111 = arith.addf %109, %110 : vector<4x1x8xf32>
    %cst_32 = arith.constant 5.000000e-01 : f32
    %112 = vector.broadcast %cst_32 : f32 to vector<4x1x8xf32>
    %113 = arith.mulf %111, %112 : vector<4x1x8xf32>
    %114 = vector.extract_strided_slice %57 {offsets = [0, 16, 0], sizes = [4, 1, 8], strides = [1, 1, 1]} : vector<4x30x8xf32> to vector<4x1x8xf32>
    %cst_33 = arith.constant 0.000000e+00 : f32
    %115 = vector.broadcast %cst_33 : f32 to vector<4x1x8xf32>
    %116 = arith.addf %115, %114 : vector<4x1x8xf32>
    %117 = vector.extract_strided_slice %57 {offsets = [0, 17, 0], sizes = [4, 1, 8], strides = [1, 1, 1]} : vector<4x30x8xf32> to vector<4x1x8xf32>
    %118 = arith.addf %116, %117 : vector<4x1x8xf32>
    %cst_34 = arith.constant 5.000000e-01 : f32
    %119 = vector.broadcast %cst_34 : f32 to vector<4x1x8xf32>
    %120 = arith.mulf %118, %119 : vector<4x1x8xf32>
    %121 = vector.extract_strided_slice %57 {offsets = [0, 18, 0], sizes = [4, 1, 8], strides = [1, 1, 1]} : vector<4x30x8xf32> to vector<4x1x8xf32>
    %cst_35 = arith.constant 0.000000e+00 : f32
    %122 = vector.broadcast %cst_35 : f32 to vector<4x1x8xf32>
    %123 = arith.addf %122, %121 : vector<4x1x8xf32>
    %124 = vector.extract_strided_slice %57 {offsets = [0, 19, 0], sizes = [4, 1, 8], strides = [1, 1, 1]} : vector<4x30x8xf32> to vector<4x1x8xf32>
    %125 = arith.addf %123, %124 : vector<4x1x8xf32>
    %cst_36 = arith.constant 5.000000e-01 : f32
    %126 = vector.broadcast %cst_36 : f32 to vector<4x1x8xf32>
    %127 = arith.mulf %125, %126 : vector<4x1x8xf32>
    %128 = vector.extract_strided_slice %57 {offsets = [0, 20, 0], sizes = [4, 1, 8], strides = [1, 1, 1]} : vector<4x30x8xf32> to vector<4x1x8xf32>
    %cst_37 = arith.constant 0.000000e+00 : f32
    %129 = vector.broadcast %cst_37 : f32 to vector<4x1x8xf32>
    %130 = arith.addf %129, %128 : vector<4x1x8xf32>
    %131 = vector.extract_strided_slice %57 {offsets = [0, 21, 0], sizes = [4, 1, 8], strides = [1, 1, 1]} : vector<4x30x8xf32> to vector<4x1x8xf32>
    %132 = arith.addf %130, %131 : vector<4x1x8xf32>
    %cst_38 = arith.constant 5.000000e-01 : f32
    %133 = vector.broadcast %cst_38 : f32 to vector<4x1x8xf32>
    %134 = arith.mulf %132, %133 : vector<4x1x8xf32>
    %135 = vector.extract_strided_slice %57 {offsets = [0, 22, 0], sizes = [4, 1, 8], strides = [1, 1, 1]} : vector<4x30x8xf32> to vector<4x1x8xf32>
    %cst_39 = arith.constant 0.000000e+00 : f32
    %136 = vector.broadcast %cst_39 : f32 to vector<4x1x8xf32>
    %137 = arith.addf %136, %135 : vector<4x1x8xf32>
    %138 = vector.extract_strided_slice %57 {offsets = [0, 23, 0], sizes = [4, 1, 8], strides = [1, 1, 1]} : vector<4x30x8xf32> to vector<4x1x8xf32>
    %139 = arith.addf %137, %138 : vector<4x1x8xf32>
    %cst_40 = arith.constant 5.000000e-01 : f32
    %140 = vector.broadcast %cst_40 : f32 to vector<4x1x8xf32>
    %141 = arith.mulf %139, %140 : vector<4x1x8xf32>
    %142 = vector.extract_strided_slice %57 {offsets = [0, 24, 0], sizes = [4, 1, 8], strides = [1, 1, 1]} : vector<4x30x8xf32> to vector<4x1x8xf32>
    %cst_41 = arith.constant 0.000000e+00 : f32
    %143 = vector.broadcast %cst_41 : f32 to vector<4x1x8xf32>
    %144 = arith.addf %143, %142 : vector<4x1x8xf32>
    %145 = vector.extract_strided_slice %57 {offsets = [0, 25, 0], sizes = [4, 1, 8], strides = [1, 1, 1]} : vector<4x30x8xf32> to vector<4x1x8xf32>
    %146 = arith.addf %144, %145 : vector<4x1x8xf32>
    %cst_42 = arith.constant 5.000000e-01 : f32
    %147 = vector.broadcast %cst_42 : f32 to vector<4x1x8xf32>
    %148 = arith.mulf %146, %147 : vector<4x1x8xf32>
    %149 = vector.extract_strided_slice %57 {offsets = [0, 26, 0], sizes = [4, 1, 8], strides = [1, 1, 1]} : vector<4x30x8xf32> to vector<4x1x8xf32>
    %cst_43 = arith.constant 0.000000e+00 : f32
    %150 = vector.broadcast %cst_43 : f32 to vector<4x1x8xf32>
    %151 = arith.addf %150, %149 : vector<4x1x8xf32>
    %152 = vector.extract_strided_slice %57 {offsets = [0, 27, 0], sizes = [4, 1, 8], strides = [1, 1, 1]} : vector<4x30x8xf32> to vector<4x1x8xf32>
    %153 = arith.addf %151, %152 : vector<4x1x8xf32>
    %cst_44 = arith.constant 5.000000e-01 : f32
    %154 = vector.broadcast %cst_44 : f32 to vector<4x1x8xf32>
    %155 = arith.mulf %153, %154 : vector<4x1x8xf32>
    %156 = vector.extract_strided_slice %57 {offsets = [0, 28, 0], sizes = [4, 1, 8], strides = [1, 1, 1]} : vector<4x30x8xf32> to vector<4x1x8xf32>
    %cst_45 = arith.constant 0.000000e+00 : f32
    %157 = vector.broadcast %cst_45 : f32 to vector<4x1x8xf32>
    %158 = arith.addf %157, %156 : vector<4x1x8xf32>
    %159 = vector.extract_strided_slice %57 {offsets = [0, 29, 0], sizes = [4, 1, 8], strides = [1, 1, 1]} : vector<4x30x8xf32> to vector<4x1x8xf32>
    %160 = arith.addf %158, %159 : vector<4x1x8xf32>
    %cst_46 = arith.constant 5.000000e-01 : f32
    %161 = vector.broadcast %cst_46 : f32 to vector<4x1x8xf32>
    %162 = arith.mulf %160, %161 : vector<4x1x8xf32>
    %163 = tpu.concatenate %64, %71, %78, %85, %92, %99, %106, %113, %120, %127, %134, %141, %148, %155, %162 in 1 : vector<4x1x8xf32>, vector<4x1x8xf32>, vector<4x1x8xf32>, vector<4x1x8xf32>, vector<4x1x8xf32>, vector<4x1x8xf32>, vector<4x1x8xf32>, vector<4x1x8xf32>, vector<4x1x8xf32>, vector<4x1x8xf32>, vector<4x1x8xf32>, vector<4x1x8xf32>, vector<4x1x8xf32>, vector<4x1x8xf32>, vector<4x1x8xf32> -> vector<4x15x8xf32>
    %c0_47 = arith.constant 0 : index
    %c0_48 = arith.constant 0 : index
    %164 = vector.load %arg5[%c0_47, %c0_48] : memref<24x16xf32, #tpu.memory_space<vmem>>, vector<24x16xf32>
    %165 = vector.extract_strided_slice %163 {offsets = [0, 0, 0], sizes = [4, 13, 8], strides = [1, 1, 1]} : vector<4x15x8xf32> to vector<4x13x8xf32>
    %166 = vector.extract_strided_slice %163 {offsets = [0, 1, 0], sizes = [4, 13, 8], strides = [1, 1, 1]} : vector<4x15x8xf32> to vector<4x13x8xf32>
    %167 = vector.extract_strided_slice %163 {offsets = [0, 2, 0], sizes = [4, 13, 8], strides = [1, 1, 1]} : vector<4x15x8xf32> to vector<4x13x8xf32>
    %168 = tpu.concatenate %165, %166, %167 in 2 : vector<4x13x8xf32>, vector<4x13x8xf32>, vector<4x13x8xf32> -> vector<4x13x24xf32>
    %169 = vector.extract_strided_slice %168 {offsets = [0, 0, 0], sizes = [1, 13, 24], strides = [1, 1, 1]} : vector<4x13x24xf32> to vector<1x13x24xf32>
    %170 = vector.shape_cast %169 : vector<1x13x24xf32> to vector<13x24xf32>
    %171 = vector.extract_strided_slice %168 {offsets = [1, 0, 0], sizes = [1, 13, 24], strides = [1, 1, 1]} : vector<4x13x24xf32> to vector<1x13x24xf32>
    %172 = vector.shape_cast %171 : vector<1x13x24xf32> to vector<13x24xf32>
    %173 = vector.extract_strided_slice %168 {offsets = [2, 0, 0], sizes = [1, 13, 24], strides = [1, 1, 1]} : vector<4x13x24xf32> to vector<1x13x24xf32>
    %174 = vector.shape_cast %173 : vector<1x13x24xf32> to vector<13x24xf32>
    %175 = vector.extract_strided_slice %168 {offsets = [3, 0, 0], sizes = [1, 13, 24], strides = [1, 1, 1]} : vector<4x13x24xf32> to vector<1x13x24xf32>
    %176 = vector.shape_cast %175 : vector<1x13x24xf32> to vector<13x24xf32>
    %177 = tpu.concatenate %170, %172, %174, %176 in 0 : vector<13x24xf32>, vector<13x24xf32>, vector<13x24xf32>, vector<13x24xf32> -> vector<52x24xf32>
    %cst_49 = arith.constant dense<0.000000e+00> : vector<52x16xf32>
    %178 = tpu.matmul %177, %164, %cst_49 {dimension_numbers = #tpu.dot_dimension_numbers<[1], [0], [0], [1], [0, 0, 1, 1], [], []>} : vector<52x24xf32>, vector<24x16xf32>, vector<52x16xf32> -> vector<52x16xf32>
    %c0_50 = arith.constant 0 : index
    %c0_51 = arith.constant 0 : index
    %179 = vector.load %arg6[%c0_50, %c0_51] : memref<1x16xf32, #tpu.memory_space<vmem>>, vector<1x16xf32>
    %180 = vector.broadcast %179 : vector<1x16xf32> to vector<52x16xf32>
    %181 = arith.addf %178, %180 : vector<52x16xf32>
    %cst_52 = arith.constant dense<0.000000e+00> : vector<16xf32>
    %182 = vector.multi_reduction <add>, %181, %cst_52 [0] : vector<52x16xf32> to vector<16xf32>
    %183 = vector.shape_cast %182 : vector<16xf32> to vector<1x16xf32>
    %cst_53 = arith.constant 0.0192307699 : f32
    %184 = vector.broadcast %cst_53 : f32 to vector<1x16xf32>
    %185 = arith.mulf %183, %184 : vector<1x16xf32>
    %186 = vector.broadcast %185 : vector<1x16xf32> to vector<52x16xf32>
    %187 = arith.subf %181, %186 : vector<52x16xf32>
    %188 = arith.mulf %187, %187 : vector<52x16xf32>
    %cst_54 = arith.constant dense<0.000000e+00> : vector<16xf32>
    %189 = vector.multi_reduction <add>, %188, %cst_54 [0] : vector<52x16xf32> to vector<16xf32>
    %190 = vector.shape_cast %189 : vector<16xf32> to vector<1x16xf32>
    %cst_55 = arith.constant 0.0192307699 : f32
    %191 = vector.broadcast %cst_55 : f32 to vector<1x16xf32>
    %192 = arith.mulf %190, %191 : vector<1x16xf32>
    %cst_56 = arith.constant 9.99999974E-6 : f32
    %193 = vector.broadcast %cst_56 : f32 to vector<1x16xf32>
    %194 = arith.addf %192, %193 : vector<1x16xf32>
    %195 = math.rsqrt %194 : vector<1x16xf32>
    %196 = vector.broadcast %195 : vector<1x16xf32> to vector<52x16xf32>
    %197 = arith.mulf %187, %196 : vector<52x16xf32>
    %c0_57 = arith.constant 0 : index
    %c0_58 = arith.constant 0 : index
    %198 = vector.load %arg7[%c0_57, %c0_58] : memref<1x16xf32, #tpu.memory_space<vmem>>, vector<1x16xf32>
    %199 = vector.broadcast %198 : vector<1x16xf32> to vector<52x16xf32>
    %200 = arith.mulf %197, %199 : vector<52x16xf32>
    %c0_59 = arith.constant 0 : index
    %c0_60 = arith.constant 0 : index
    %201 = vector.load %arg8[%c0_59, %c0_60] : memref<1x16xf32, #tpu.memory_space<vmem>>, vector<1x16xf32>
    %202 = vector.broadcast %201 : vector<1x16xf32> to vector<52x16xf32>
    %203 = arith.addf %200, %202 : vector<52x16xf32>
    %cst_61 = arith.constant 0.000000e+00 : f32
    %204 = vector.broadcast %cst_61 : f32 to vector<52x16xf32>
    %205 = arith.cmpf ogt, %203, %204 : vector<52x16xf32>
    %cst_62 = arith.constant 0.000000e+00 : f32
    %206 = vector.broadcast %cst_62 : f32 to vector<52x16xf32>
    %207 = arith.minimumf %203, %206 : vector<52x16xf32>
    %208 = math.exp %207 : vector<52x16xf32>
    %cst_63 = arith.constant 1.000000e+00 : f32
    %209 = vector.broadcast %cst_63 : f32 to vector<52x16xf32>
    %210 = arith.subf %208, %209 : vector<52x16xf32>
    %211 = arith.select %205, %203, %210 : vector<52x16xi1>, vector<52x16xf32>
    %212 = vector.extract_strided_slice %211 {offsets = [0, 0], sizes = [13, 16], strides = [1, 1]} : vector<52x16xf32> to vector<13x16xf32>
    %213 = vector.shape_cast %212 : vector<13x16xf32> to vector<1x13x16xf32>
    %214 = vector.extract_strided_slice %211 {offsets = [13, 0], sizes = [13, 16], strides = [1, 1]} : vector<52x16xf32> to vector<13x16xf32>
    %215 = vector.shape_cast %214 : vector<13x16xf32> to vector<1x13x16xf32>
    %216 = vector.extract_strided_slice %211 {offsets = [26, 0], sizes = [13, 16], strides = [1, 1]} : vector<52x16xf32> to vector<13x16xf32>
    %217 = vector.shape_cast %216 : vector<13x16xf32> to vector<1x13x16xf32>
    %218 = vector.extract_strided_slice %211 {offsets = [39, 0], sizes = [13, 16], strides = [1, 1]} : vector<52x16xf32> to vector<13x16xf32>
    %219 = vector.shape_cast %218 : vector<13x16xf32> to vector<1x13x16xf32>
    %220 = tpu.concatenate %213, %215, %217, %219 in 0 : vector<1x13x16xf32>, vector<1x13x16xf32>, vector<1x13x16xf32>, vector<1x13x16xf32> -> vector<4x13x16xf32>
    %221 = vector.extract_strided_slice %220 {offsets = [0, 0, 0], sizes = [4, 1, 16], strides = [1, 1, 1]} : vector<4x13x16xf32> to vector<4x1x16xf32>
    %cst_64 = arith.constant 0.000000e+00 : f32
    %222 = vector.broadcast %cst_64 : f32 to vector<4x1x16xf32>
    %223 = arith.addf %222, %221 : vector<4x1x16xf32>
    %224 = vector.extract_strided_slice %220 {offsets = [0, 1, 0], sizes = [4, 1, 16], strides = [1, 1, 1]} : vector<4x13x16xf32> to vector<4x1x16xf32>
    %225 = arith.addf %223, %224 : vector<4x1x16xf32>
    %cst_65 = arith.constant 5.000000e-01 : f32
    %226 = vector.broadcast %cst_65 : f32 to vector<4x1x16xf32>
    %227 = arith.mulf %225, %226 : vector<4x1x16xf32>
    %228 = vector.extract_strided_slice %220 {offsets = [0, 2, 0], sizes = [4, 1, 16], strides = [1, 1, 1]} : vector<4x13x16xf32> to vector<4x1x16xf32>
    %cst_66 = arith.constant 0.000000e+00 : f32
    %229 = vector.broadcast %cst_66 : f32 to vector<4x1x16xf32>
    %230 = arith.addf %229, %228 : vector<4x1x16xf32>
    %231 = vector.extract_strided_slice %220 {offsets = [0, 3, 0], sizes = [4, 1, 16], strides = [1, 1, 1]} : vector<4x13x16xf32> to vector<4x1x16xf32>
    %232 = arith.addf %230, %231 : vector<4x1x16xf32>
    %cst_67 = arith.constant 5.000000e-01 : f32
    %233 = vector.broadcast %cst_67 : f32 to vector<4x1x16xf32>
    %234 = arith.mulf %232, %233 : vector<4x1x16xf32>
    %235 = vector.extract_strided_slice %220 {offsets = [0, 4, 0], sizes = [4, 1, 16], strides = [1, 1, 1]} : vector<4x13x16xf32> to vector<4x1x16xf32>
    %cst_68 = arith.constant 0.000000e+00 : f32
    %236 = vector.broadcast %cst_68 : f32 to vector<4x1x16xf32>
    %237 = arith.addf %236, %235 : vector<4x1x16xf32>
    %238 = vector.extract_strided_slice %220 {offsets = [0, 5, 0], sizes = [4, 1, 16], strides = [1, 1, 1]} : vector<4x13x16xf32> to vector<4x1x16xf32>
    %239 = arith.addf %237, %238 : vector<4x1x16xf32>
    %cst_69 = arith.constant 5.000000e-01 : f32
    %240 = vector.broadcast %cst_69 : f32 to vector<4x1x16xf32>
    %241 = arith.mulf %239, %240 : vector<4x1x16xf32>
    %242 = vector.extract_strided_slice %220 {offsets = [0, 6, 0], sizes = [4, 1, 16], strides = [1, 1, 1]} : vector<4x13x16xf32> to vector<4x1x16xf32>
    %cst_70 = arith.constant 0.000000e+00 : f32
    %243 = vector.broadcast %cst_70 : f32 to vector<4x1x16xf32>
    %244 = arith.addf %243, %242 : vector<4x1x16xf32>
    %245 = vector.extract_strided_slice %220 {offsets = [0, 7, 0], sizes = [4, 1, 16], strides = [1, 1, 1]} : vector<4x13x16xf32> to vector<4x1x16xf32>
    %246 = arith.addf %244, %245 : vector<4x1x16xf32>
    %cst_71 = arith.constant 5.000000e-01 : f32
    %247 = vector.broadcast %cst_71 : f32 to vector<4x1x16xf32>
    %248 = arith.mulf %246, %247 : vector<4x1x16xf32>
    %249 = vector.extract_strided_slice %220 {offsets = [0, 8, 0], sizes = [4, 1, 16], strides = [1, 1, 1]} : vector<4x13x16xf32> to vector<4x1x16xf32>
    %cst_72 = arith.constant 0.000000e+00 : f32
    %250 = vector.broadcast %cst_72 : f32 to vector<4x1x16xf32>
    %251 = arith.addf %250, %249 : vector<4x1x16xf32>
    %252 = vector.extract_strided_slice %220 {offsets = [0, 9, 0], sizes = [4, 1, 16], strides = [1, 1, 1]} : vector<4x13x16xf32> to vector<4x1x16xf32>
    %253 = arith.addf %251, %252 : vector<4x1x16xf32>
    %cst_73 = arith.constant 5.000000e-01 : f32
    %254 = vector.broadcast %cst_73 : f32 to vector<4x1x16xf32>
    %255 = arith.mulf %253, %254 : vector<4x1x16xf32>
    %256 = vector.extract_strided_slice %220 {offsets = [0, 10, 0], sizes = [4, 1, 16], strides = [1, 1, 1]} : vector<4x13x16xf32> to vector<4x1x16xf32>
    %cst_74 = arith.constant 0.000000e+00 : f32
    %257 = vector.broadcast %cst_74 : f32 to vector<4x1x16xf32>
    %258 = arith.addf %257, %256 : vector<4x1x16xf32>
    %259 = vector.extract_strided_slice %220 {offsets = [0, 11, 0], sizes = [4, 1, 16], strides = [1, 1, 1]} : vector<4x13x16xf32> to vector<4x1x16xf32>
    %260 = arith.addf %258, %259 : vector<4x1x16xf32>
    %cst_75 = arith.constant 5.000000e-01 : f32
    %261 = vector.broadcast %cst_75 : f32 to vector<4x1x16xf32>
    %262 = arith.mulf %260, %261 : vector<4x1x16xf32>
    %263 = tpu.concatenate %227, %234, %241, %248, %255, %262 in 1 : vector<4x1x16xf32>, vector<4x1x16xf32>, vector<4x1x16xf32>, vector<4x1x16xf32>, vector<4x1x16xf32>, vector<4x1x16xf32> -> vector<4x6x16xf32>
    %c0_76 = arith.constant 0 : index
    %c0_77 = arith.constant 0 : index
    %264 = vector.load %arg9[%c0_76, %c0_77] : memref<48x32xf32, #tpu.memory_space<vmem>>, vector<48x32xf32>
    %265 = vector.extract_strided_slice %263 {offsets = [0, 0, 0], sizes = [4, 4, 16], strides = [1, 1, 1]} : vector<4x6x16xf32> to vector<4x4x16xf32>
    %266 = vector.extract_strided_slice %263 {offsets = [0, 1, 0], sizes = [4, 4, 16], strides = [1, 1, 1]} : vector<4x6x16xf32> to vector<4x4x16xf32>
    %267 = vector.extract_strided_slice %263 {offsets = [0, 2, 0], sizes = [4, 4, 16], strides = [1, 1, 1]} : vector<4x6x16xf32> to vector<4x4x16xf32>
    %268 = tpu.concatenate %265, %266, %267 in 2 : vector<4x4x16xf32>, vector<4x4x16xf32>, vector<4x4x16xf32> -> vector<4x4x48xf32>
    %269 = vector.extract_strided_slice %268 {offsets = [0, 0, 0], sizes = [1, 4, 48], strides = [1, 1, 1]} : vector<4x4x48xf32> to vector<1x4x48xf32>
    %270 = vector.shape_cast %269 : vector<1x4x48xf32> to vector<4x48xf32>
    %271 = vector.extract_strided_slice %268 {offsets = [1, 0, 0], sizes = [1, 4, 48], strides = [1, 1, 1]} : vector<4x4x48xf32> to vector<1x4x48xf32>
    %272 = vector.shape_cast %271 : vector<1x4x48xf32> to vector<4x48xf32>
    %273 = vector.extract_strided_slice %268 {offsets = [2, 0, 0], sizes = [1, 4, 48], strides = [1, 1, 1]} : vector<4x4x48xf32> to vector<1x4x48xf32>
    %274 = vector.shape_cast %273 : vector<1x4x48xf32> to vector<4x48xf32>
    %275 = vector.extract_strided_slice %268 {offsets = [3, 0, 0], sizes = [1, 4, 48], strides = [1, 1, 1]} : vector<4x4x48xf32> to vector<1x4x48xf32>
    %276 = vector.shape_cast %275 : vector<1x4x48xf32> to vector<4x48xf32>
    %277 = tpu.concatenate %270, %272, %274, %276 in 0 : vector<4x48xf32>, vector<4x48xf32>, vector<4x48xf32>, vector<4x48xf32> -> vector<16x48xf32>
    %cst_78 = arith.constant dense<0.000000e+00> : vector<16x32xf32>
    %278 = tpu.matmul %277, %264, %cst_78 {dimension_numbers = #tpu.dot_dimension_numbers<[1], [0], [0], [1], [0, 0, 1, 1], [], []>} : vector<16x48xf32>, vector<48x32xf32>, vector<16x32xf32> -> vector<16x32xf32>
    %c0_79 = arith.constant 0 : index
    %c0_80 = arith.constant 0 : index
    %279 = vector.load %arg10[%c0_79, %c0_80] : memref<1x32xf32, #tpu.memory_space<vmem>>, vector<1x32xf32>
    %280 = vector.broadcast %279 : vector<1x32xf32> to vector<16x32xf32>
    %281 = arith.addf %278, %280 : vector<16x32xf32>
    %cst_81 = arith.constant dense<0.000000e+00> : vector<32xf32>
    %282 = vector.multi_reduction <add>, %281, %cst_81 [0] : vector<16x32xf32> to vector<32xf32>
    %283 = vector.shape_cast %282 : vector<32xf32> to vector<1x32xf32>
    %cst_82 = arith.constant 6.250000e-02 : f32
    %284 = vector.broadcast %cst_82 : f32 to vector<1x32xf32>
    %285 = arith.mulf %283, %284 : vector<1x32xf32>
    %286 = vector.broadcast %285 : vector<1x32xf32> to vector<16x32xf32>
    %287 = arith.subf %281, %286 : vector<16x32xf32>
    %288 = arith.mulf %287, %287 : vector<16x32xf32>
    %cst_83 = arith.constant dense<0.000000e+00> : vector<32xf32>
    %289 = vector.multi_reduction <add>, %288, %cst_83 [0] : vector<16x32xf32> to vector<32xf32>
    %290 = vector.shape_cast %289 : vector<32xf32> to vector<1x32xf32>
    %cst_84 = arith.constant 6.250000e-02 : f32
    %291 = vector.broadcast %cst_84 : f32 to vector<1x32xf32>
    %292 = arith.mulf %290, %291 : vector<1x32xf32>
    %cst_85 = arith.constant 9.99999974E-6 : f32
    %293 = vector.broadcast %cst_85 : f32 to vector<1x32xf32>
    %294 = arith.addf %292, %293 : vector<1x32xf32>
    %295 = math.rsqrt %294 : vector<1x32xf32>
    %296 = vector.broadcast %295 : vector<1x32xf32> to vector<16x32xf32>
    %297 = arith.mulf %287, %296 : vector<16x32xf32>
    %c0_86 = arith.constant 0 : index
    %c0_87 = arith.constant 0 : index
    %298 = vector.load %arg11[%c0_86, %c0_87] : memref<1x32xf32, #tpu.memory_space<vmem>>, vector<1x32xf32>
    %299 = vector.broadcast %298 : vector<1x32xf32> to vector<16x32xf32>
    %300 = arith.mulf %297, %299 : vector<16x32xf32>
    %c0_88 = arith.constant 0 : index
    %c0_89 = arith.constant 0 : index
    %301 = vector.load %arg12[%c0_88, %c0_89] : memref<1x32xf32, #tpu.memory_space<vmem>>, vector<1x32xf32>
    %302 = vector.broadcast %301 : vector<1x32xf32> to vector<16x32xf32>
    %303 = arith.addf %300, %302 : vector<16x32xf32>
    %cst_90 = arith.constant 0.000000e+00 : f32
    %304 = vector.broadcast %cst_90 : f32 to vector<16x32xf32>
    %305 = arith.cmpf ogt, %303, %304 : vector<16x32xf32>
    %cst_91 = arith.constant 0.000000e+00 : f32
    %306 = vector.broadcast %cst_91 : f32 to vector<16x32xf32>
    %307 = arith.minimumf %303, %306 : vector<16x32xf32>
    %308 = math.exp %307 : vector<16x32xf32>
    %cst_92 = arith.constant 1.000000e+00 : f32
    %309 = vector.broadcast %cst_92 : f32 to vector<16x32xf32>
    %310 = arith.subf %308, %309 : vector<16x32xf32>
    %311 = arith.select %305, %303, %310 : vector<16x32xi1>, vector<16x32xf32>
    %312 = vector.extract_strided_slice %311 {offsets = [0, 0], sizes = [4, 32], strides = [1, 1]} : vector<16x32xf32> to vector<4x32xf32>
    %313 = vector.shape_cast %312 : vector<4x32xf32> to vector<1x4x32xf32>
    %314 = vector.extract_strided_slice %311 {offsets = [4, 0], sizes = [4, 32], strides = [1, 1]} : vector<16x32xf32> to vector<4x32xf32>
    %315 = vector.shape_cast %314 : vector<4x32xf32> to vector<1x4x32xf32>
    %316 = vector.extract_strided_slice %311 {offsets = [8, 0], sizes = [4, 32], strides = [1, 1]} : vector<16x32xf32> to vector<4x32xf32>
    %317 = vector.shape_cast %316 : vector<4x32xf32> to vector<1x4x32xf32>
    %318 = vector.extract_strided_slice %311 {offsets = [12, 0], sizes = [4, 32], strides = [1, 1]} : vector<16x32xf32> to vector<4x32xf32>
    %319 = vector.shape_cast %318 : vector<4x32xf32> to vector<1x4x32xf32>
    %320 = tpu.concatenate %313, %315, %317, %319 in 0 : vector<1x4x32xf32>, vector<1x4x32xf32>, vector<1x4x32xf32>, vector<1x4x32xf32> -> vector<4x4x32xf32>
    %321 = vector.extract_strided_slice %320 {offsets = [0, 0, 0], sizes = [4, 1, 32], strides = [1, 1, 1]} : vector<4x4x32xf32> to vector<4x1x32xf32>
    %cst_93 = arith.constant 0.000000e+00 : f32
    %322 = vector.broadcast %cst_93 : f32 to vector<4x1x32xf32>
    %323 = arith.addf %322, %321 : vector<4x1x32xf32>
    %324 = vector.extract_strided_slice %320 {offsets = [0, 1, 0], sizes = [4, 1, 32], strides = [1, 1, 1]} : vector<4x4x32xf32> to vector<4x1x32xf32>
    %325 = arith.addf %323, %324 : vector<4x1x32xf32>
    %cst_94 = arith.constant 5.000000e-01 : f32
    %326 = vector.broadcast %cst_94 : f32 to vector<4x1x32xf32>
    %327 = arith.mulf %325, %326 : vector<4x1x32xf32>
    %328 = vector.extract_strided_slice %320 {offsets = [0, 2, 0], sizes = [4, 1, 32], strides = [1, 1, 1]} : vector<4x4x32xf32> to vector<4x1x32xf32>
    %cst_95 = arith.constant 0.000000e+00 : f32
    %329 = vector.broadcast %cst_95 : f32 to vector<4x1x32xf32>
    %330 = arith.addf %329, %328 : vector<4x1x32xf32>
    %331 = vector.extract_strided_slice %320 {offsets = [0, 3, 0], sizes = [4, 1, 32], strides = [1, 1, 1]} : vector<4x4x32xf32> to vector<4x1x32xf32>
    %332 = arith.addf %330, %331 : vector<4x1x32xf32>
    %cst_96 = arith.constant 5.000000e-01 : f32
    %333 = vector.broadcast %cst_96 : f32 to vector<4x1x32xf32>
    %334 = arith.mulf %332, %333 : vector<4x1x32xf32>
    %335 = tpu.concatenate %327, %334 in 1 : vector<4x1x32xf32>, vector<4x1x32xf32> -> vector<4x2x32xf32>
    %336 = vector.extract_strided_slice %335 {offsets = [0, 0, 0], sizes = [2, 1, 32], strides = [1, 1, 1]} : vector<4x2x32xf32> to vector<2x1x32xf32>
    %337 = vector.shape_cast %336 : vector<2x1x32xf32> to vector<2x32xf32>
    %338 = vector.extract_strided_slice %335 {offsets = [0, 1, 0], sizes = [2, 1, 32], strides = [1, 1, 1]} : vector<4x2x32xf32> to vector<2x1x32xf32>
    %339 = vector.shape_cast %338 : vector<2x1x32xf32> to vector<2x32xf32>
    %340 = vector.extract_strided_slice %335 {offsets = [2, 0, 0], sizes = [2, 1, 32], strides = [1, 1, 1]} : vector<4x2x32xf32> to vector<2x1x32xf32>
    %341 = vector.shape_cast %340 : vector<2x1x32xf32> to vector<2x32xf32>
    %342 = vector.extract_strided_slice %335 {offsets = [2, 1, 0], sizes = [2, 1, 32], strides = [1, 1, 1]} : vector<4x2x32xf32> to vector<2x1x32xf32>
    %343 = vector.shape_cast %342 : vector<2x1x32xf32> to vector<2x32xf32>
    %344 = tpu.concatenate %337, %339, %341, %343 in 1 : vector<2x32xf32>, vector<2x32xf32>, vector<2x32xf32>, vector<2x32xf32> -> vector<2x128xf32>
    %c0_97 = arith.constant 0 : index
    %c0_98 = arith.constant 0 : index
    %345 = vector.load %arg13[%c0_97, %c0_98] : memref<128x128xf32, #tpu.memory_space<vmem>>, vector<128x128xf32>
    %cst_99 = arith.constant dense<0.000000e+00> : vector<2x128xf32>
    %346 = tpu.matmul %344, %345, %cst_99 {dimension_numbers = #tpu.dot_dimension_numbers<[1], [0], [0], [1], [0, 0, 1, 1], [], []>} : vector<2x128xf32>, vector<128x128xf32>, vector<2x128xf32> -> vector<2x128xf32>
    %c0_100 = arith.constant 0 : index
    %c0_101 = arith.constant 0 : index
    %347 = vector.load %arg14[%c0_100, %c0_101] : memref<1x128xf32, #tpu.memory_space<vmem>>, vector<1x128xf32>
    %348 = vector.broadcast %347 : vector<1x128xf32> to vector<2x128xf32>
    %349 = arith.addf %346, %348 : vector<2x128xf32>
    %c0_102 = arith.constant 0 : index
    %c0_103 = arith.constant 0 : index
    %350 = vector.load %arg15[%c0_102, %c0_103] : memref<2x128xf32, #tpu.memory_space<vmem>>, vector<2x128xf32>
    tpu.vector_store %arg15[%c0_102, %c0_103], %349 {strides = array<i32>} : memref<2x128xf32, #tpu.memory_space<vmem>>, vector<2x128xf32>,
    return
  }
}

</mosaic_0001>

<llo_original>
// kernel: _arm_forward.1
$region0: #{_arm_forward.1}
  #allocation0 [shape = 'u32[]', space=smem, size = 0x4, offset = 0x4, fixed_abs, tag = 'smem constant byte address 0x4 - core index']
  #allocation1 [shape = 'u32[144,128]{1,0:T(1,128)}', space=vmem, size = 0x12000, scoped, tag = 'internal scratch']
  %s0 = inlined_call_operand.vmem [shape: f32[4,65,4], index: 0, kind: input, shape index: {}]
  %s1 = inlined_call_operand.vmem [shape: f32[12,8], index: 1, kind: input, shape index: {}]
  %s2 = inlined_call_operand.vmem [shape: f32[1,8], index: 2, kind: input, shape index: {}]
  %s3 = inlined_call_operand.vmem [shape: f32[1,8], index: 3, kind: input, shape index: {}]
  %s4 = inlined_call_operand.vmem [shape: f32[1,8], index: 4, kind: input, shape index: {}]
  %s5 = inlined_call_operand.vmem [shape: f32[24,16], index: 5, kind: input, shape index: {}]
  %s6 = inlined_call_operand.vmem [shape: f32[1,16], index: 6, kind: input, shape index: {}]
  %s7 = inlined_call_operand.vmem [shape: f32[1,16], index: 7, kind: input, shape index: {}]
  %s8 = inlined_call_operand.vmem [shape: f32[1,16], index: 8, kind: input, shape index: {}]
  %s9 = inlined_call_operand.vmem [shape: f32[48,32], index: 9, kind: input, shape index: {}]
  %s10 = inlined_call_operand.vmem [shape: f32[1,32], index: 10, kind: input, shape index: {}]
  %s11 = inlined_call_operand.vmem [shape: f32[1,32], index: 11, kind: input, shape index: {}]
  %s12 = inlined_call_operand.vmem [shape: f32[1,32], index: 12, kind: input, shape index: {}]
  %s13 = inlined_call_operand.vmem [shape: f32[128,128], index: 13, kind: input, shape index: {}]
  %s14 = inlined_call_operand.vmem [shape: f32[1,128], index: 14, kind: input, shape index: {}]
  %s15 = inlined_call_operand.hbm [shape: f32[2,128], index: 15, kind: output, shape index: {}]
  %s16 = sld [smem:[#allocation0]]
  $region70: #{_arm_forward.1} parent=0
    _
  %s18 = ssub.s32 1, %s16
  %s19 = scalar_select 0, %s18, %s16
  $region1: #{_arm_forward.1} parent=0
    #allocation2 [shape = 'u8[1024]{0}', space=vmem, size = 0x400, scoped, tag = 'output window, operand 0, single buffered']
    #allocation3 [shape = 's32[1]{0}', space=sflag, size = 0x4, scoped, tag = 'scoped memory for _arm_forward.1']
    %20 = vsyncpa [#allocation3], 0
    // Predicated region
    $region2: #{_arm_forward.1} parent=1 // pred_check
      _
    $region3: #{_arm_forward.1} parent=1 // pred_check_branch
      %22 = sbr.rel (0) target = $region5
    $region4: #{_arm_forward.1} parent=1 // pred_region
      _
    $region5: #{_arm_forward.1} parent=1 // pred_fallthru
      _
    // Predicated region
    $region6: #{_arm_forward.1} parent=1 // pred_check
      _
    $region7: #{_arm_forward.1} parent=1 // pred_check_branch
      %24 = sbr.rel (0) target = $region9
    $region8: #{_arm_forward.1} parent=1 // pred_region
      _
    $region9: #{_arm_forward.1} parent=1 // pred_fallthru
      _
    // Predicated region
    $region10: #{_arm_forward.1} parent=1 // pred_check
      _
    $region11: #{_arm_forward.1} parent=1 // pred_check_branch
      %26 = sbr.rel (0) target = $region13
    $region12: #{_arm_forward.1} parent=1 // pred_region
      _
    $region13: #{_arm_forward.1} parent=1 // pred_fallthru
      _
    // Predicated region
    $region14: #{_arm_forward.1} parent=1 // pred_check
      _
    $region15: #{_arm_forward.1} parent=1 // pred_check_branch
      %28 = sbr.rel (0) target = $region17
    $region16: #{_arm_forward.1} parent=1 // pred_region
      _
    $region17: #{_arm_forward.1} parent=1 // pred_fallthru
      _
    // Predicated region
    $region18: #{_arm_forward.1} parent=1 // pred_check
      _
    $region19: #{_arm_forward.1} parent=1 // pred_check_branch
      %30 = sbr.rel (0) target = $region21
    $region20: #{_arm_forward.1} parent=1 // pred_region
      _
    $region21: #{_arm_forward.1} parent=1 // pred_fallthru
      _
    // Predicated region
    $region22: #{_arm_forward.1} parent=1 // pred_check
      _
    $region23: #{_arm_forward.1} parent=1 // pred_check_branch
      %32 = sbr.rel (0) target = $region25
    $region24: #{_arm_forward.1} parent=1 // pred_region
      _
    $region25: #{_arm_forward.1} parent=1 // pred_fallthru
      _
    // Predicated region
    $region26: #{_arm_forward.1} parent=1 // pred_check
      _
    $region27: #{_arm_forward.1} parent=1 // pred_check_branch
      %34 = sbr.rel (0) target = $region29
    $region28: #{_arm_forward.1} parent=1 // pred_region
      _
    $region29: #{_arm_forward.1} parent=1 // pred_fallthru
      _
    // Predicated region
    $region30: #{_arm_forward.1} parent=1 // pred_check
      _
    $region31: #{_arm_forward.1} parent=1 // pred_check_branch
      %36 = sbr.rel (0) target = $region33
    $region32: #{_arm_forward.1} parent=1 // pred_region
      _
    $region33: #{_arm_forward.1} parent=1 // pred_fallthru
      _
    // Predicated region
    $region34: #{_arm_forward.1} parent=1 // pred_check
      _
    $region35: #{_arm_forward.1} parent=1 // pred_check_branch
      %38 = sbr.rel (0) target = $region37
    $region36: #{_arm_forward.1} parent=1 // pred_region
      _
    $region37: #{_arm_forward.1} parent=1 // pred_fallthru
      _
    // Predicated region
    $region38: #{_arm_forward.1} parent=1 // pred_check
      _
    $region39: #{_arm_forward.1} parent=1 // pred_check_branch
      %40 = sbr.rel (0) target = $region41
    $region40: #{_arm_forward.1} parent=1 // pred_region
      _
    $region41: #{_arm_forward.1} parent=1 // pred_fallthru
      _
    // Predicated region
    $region42: #{_arm_forward.1} parent=1 // pred_check
      _
    $region43: #{_arm_forward.1} parent=1 // pred_check_branch
      %42 = sbr.rel (0) target = $region45
    $region44: #{_arm_forward.1} parent=1 // pred_region
      _
    $region45: #{_arm_forward.1} parent=1 // pred_fallthru
      _
    // Predicated region
    $region46: #{_arm_forward.1} parent=1 // pred_check
      _
    $region47: #{_arm_forward.1} parent=1 // pred_check_branch
      %44 = sbr.rel (0) target = $region49
    $region48: #{_arm_forward.1} parent=1 // pred_region
      _
    $region49: #{_arm_forward.1} parent=1 // pred_fallthru
      _
    // Predicated region
    $region50: #{_arm_forward.1} parent=1 // pred_check
      _
    $region51: #{_arm_forward.1} parent=1 // pred_check_branch
      %46 = sbr.rel (0) target = $region53
    $region52: #{_arm_forward.1} parent=1 // pred_region
      _
    $region53: #{_arm_forward.1} parent=1 // pred_fallthru
      _
    // Predicated region
    $region54: #{_arm_forward.1} parent=1 // pred_check
      _
    $region55: #{_arm_forward.1} parent=1 // pred_check_branch
      %48 = sbr.rel (0) target = $region57
    $region56: #{_arm_forward.1} parent=1 // pred_region
      _
    $region57: #{_arm_forward.1} parent=1 // pred_fallthru
      _
    // Predicated region
    $region58: #{_arm_forward.1} parent=1 // pred_check
      _
    $region59: #{_arm_forward.1} parent=1 // pred_check_branch
      %50 = sbr.rel (0) target = $region61
    $region60: #{_arm_forward.1} parent=1 // pred_region
      _
    $region61: #{_arm_forward.1} parent=1 // pred_fallthru
      _
    %v51 = vld [vmem:[%s0 + $0x21] sm:$0xff]
    %v52 = vld [vmem:[%s0 + $0x29] sm:$0xff]
    %v53 = vld [vmem:[%s0 + $0x31] sm:$0xff]
    %v54 = vld [vmem:[%s0 + $0x39] sm:$0xff]
    %v55 = vld [vmem:[%s0 + $0x69] sm:$0xff]
    %v56 = vld [vmem:[%s0 + $0x71] sm:$0xff]
    %v57 = vld [vmem:[%s0 + $0x79] sm:$0xff]
    %v58 = vld [vmem:[%s0 + $0x81] sm:$0xff]
    %v59 = vld [vmem:[%s0 + $0xb1] sm:$0xff]
    %v60 = vld [vmem:[%s0 + $0xb9] sm:$0xff]
    %v61 = vld [vmem:[%s0 + $0xc1] sm:$0xff]
    %v62 = vld [vmem:[%s0 + $0xc9] sm:$0xff]
    %v63 = vld [vmem:[%s0 + $0xf9] sm:$0xff]
    %v64 = vld [vmem:[%s0 + $0x101] sm:$0xff]
    %v65 = vld [vmem:[%s0 + $0x109] sm:$0xff]
    %v66 = vld [vmem:[%s0 + $0x111] sm:$0xff]
    %v67 = vld [vmem:[%s1] sm:$0xff]
    %v68 = vld [vmem:[%s1 + $0x8] sm:$0xf]
    %vm85 = vcmask 1046528
    %v86 = vrot.slane %v51, 1
    %v87 = vrot.slane %v52, 1
    %v88 = vsel %vm85, %v86, %v87
    %v89 = vrot.slane %v53, 1
    %v90 = vsel %vm85, %v87, %v89
    %v91 = vrot.slane %v54, 1
    %v92 = vsel %vm85, %v89, %v91
    %v93 = vrot.slane %v55, 1
    %v94 = vrot.slane %v56, 1
    %v95 = vsel %vm85, %v93, %v94
    %v96 = vrot.slane %v57, 1
    %v97 = vsel %vm85, %v94, %v96
    %v98 = vrot.slane %v58, 1
    %v99 = vsel %vm85, %v96, %v98
    %v100 = vrot.slane %v59, 1
    %v101 = vrot.slane %v60, 1
    %v102 = vsel %vm85, %v100, %v101
    %v103 = vrot.slane %v61, 1
    %v104 = vsel %vm85, %v101, %v103
    %v105 = vrot.slane %v62, 1
    %v106 = vsel %vm85, %v103, %v105
    %v107 = vrot.slane %v63, 1
    %v108 = vrot.slane %v64, 1
    %v109 = vsel %vm85, %v107, %v108
    %v110 = vrot.slane %v65, 1
    %v111 = vsel %vm85, %v108, %v110
    %v112 = vrot.slane %v66, 1
    %v113 = vsel %vm85, %v110, %v112
    %114 = vrot.lane.b32.xlu0 %v88, 4
    %v115 = vpop.permute.xlu0 %114
    %116 = vrot.lane.b32.xlu0 %v90, 4
    %v117 = vpop.permute.xlu0 %116
    %118 = vrot.lane.b32.xlu0 %v92, 4
    %v119 = vpop.permute.xlu0 %118
    %120 = vrot.lane.b32.xlu0 %v91, 4
    %v121 = vpop.permute.xlu0 %120
    %122 = vrot.lane.b32.xlu0 %v95, 4
    %v123 = vpop.permute.xlu0 %122
    %124 = vrot.lane.b32.xlu0 %v97, 4
    %v125 = vpop.permute.xlu0 %124
    %126 = vrot.lane.b32.xlu0 %v99, 4
    %v127 = vpop.permute.xlu0 %126
    %128 = vrot.lane.b32.xlu0 %v98, 4
    %v129 = vpop.permute.xlu0 %128
    %130 = vrot.lane.b32.xlu0 %v102, 4
    %v131 = vpop.permute.xlu0 %130
    %132 = vrot.lane.b32.xlu0 %v104, 4
    %v133 = vpop.permute.xlu0 %132
    %134 = vrot.lane.b32.xlu0 %v106, 4
    %v135 = vpop.permute.xlu0 %134
    %136 = vrot.lane.b32.xlu0 %v105, 4
    %v137 = vpop.permute.xlu0 %136
    %138 = vrot.lane.b32.xlu0 %v109, 4
    %v139 = vpop.permute.xlu0 %138
    %140 = vrot.lane.b32.xlu0 %v111, 4
    %v141 = vpop.permute.xlu0 %140
    %142 = vrot.lane.b32.xlu0 %v113, 4
    %v143 = vpop.permute.xlu0 %142
    %144 = vrot.lane.b32.xlu0 %v112, 4
    %v145 = vpop.permute.xlu0 %144
    %vm162 = vcmask 1045504
    %v163 = vrot.slane %v51, 2
    %v164 = vrot.slane %v52, 2
    %v165 = vsel %vm162, %v163, %v164
    %v166 = vrot.slane %v53, 2
    %v167 = vsel %vm162, %v164, %v166
    %v168 = vrot.slane %v54, 2
    %v169 = vsel %vm162, %v166, %v168
    %v170 = vrot.slane %v55, 2
    %v171 = vrot.slane %v56, 2
    %v172 = vsel %vm162, %v170, %v171
    %v173 = vrot.slane %v57, 2
    %v174 = vsel %vm162, %v171, %v173
    %v175 = vrot.slane %v58, 2
    %v176 = vsel %vm162, %v173, %v175
    %v177 = vrot.slane %v59, 2
    %v178 = vrot.slane %v60, 2
    %v179 = vsel %vm162, %v177, %v178
    %v180 = vrot.slane %v61, 2
    %v181 = vsel %vm162, %v178, %v180
    %v182 = vrot.slane %v62, 2
    %v183 = vsel %vm162, %v180, %v182
    %v184 = vrot.slane %v63, 2
    %v185 = vrot.slane %v64, 2
    %v186 = vsel %vm162, %v184, %v185
    %v187 = vrot.slane %v65, 2
    %v188 = vsel %vm162, %v185, %v187
    %v189 = vrot.slane %v66, 2
    %v190 = vsel %vm162, %v187, %v189
    %191 = vrot.lane.b32.xlu0 %v165, 8
    %v192 = vpop.permute.xlu0 %191
    %193 = vrot.lane.b32.xlu0 %v167, 8
    %v194 = vpop.permute.xlu0 %193
    %195 = vrot.lane.b32.xlu0 %v169, 8
    %v196 = vpop.permute.xlu0 %195
    %197 = vrot.lane.b32.xlu0 %v168, 8
    %v198 = vpop.permute.xlu0 %197
    %199 = vrot.lane.b32.xlu0 %v172, 8
    %v200 = vpop.permute.xlu0 %199
    %201 = vrot.lane.b32.xlu0 %v174, 8
    %v202 = vpop.permute.xlu0 %201
    %203 = vrot.lane.b32.xlu0 %v176, 8
    %v204 = vpop.permute.xlu0 %203
    %205 = vrot.lane.b32.xlu0 %v175, 8
    %v206 = vpop.permute.xlu0 %205
    %207 = vrot.lane.b32.xlu0 %v179, 8
    %v208 = vpop.permute.xlu0 %207
    %209 = vrot.lane.b32.xlu0 %v181, 8
    %v210 = vpop.permute.xlu0 %209
    %211 = vrot.lane.b32.xlu0 %v183, 8
    %v212 = vpop.permute.xlu0 %211
    %213 = vrot.lane.b32.xlu0 %v182, 8
    %v214 = vpop.permute.xlu0 %213
    %215 = vrot.lane.b32.xlu0 %v186, 8
    %v216 = vpop.permute.xlu0 %215
    %217 = vrot.lane.b32.xlu0 %v188, 8
    %v218 = vpop.permute.xlu0 %217
    %219 = vrot.lane.b32.xlu0 %v190, 8
    %v220 = vpop.permute.xlu0 %219
    %221 = vrot.lane.b32.xlu0 %v189, 8
    %v222 = vpop.permute.xlu0 %221
    %vm239 = vcmask 31744
    %v240 = vsel %vm239, %v51, %v115
    %v241 = vsel %vm239, %v52, %v117
    %v242 = vsel %vm239, %v53, %v119
    %v243 = vsel %vm239, %v54, %v121
    %v244 = vsel %vm239, %v55, %v123
    %v245 = vsel %vm239, %v56, %v125
    %v246 = vsel %vm239, %v57, %v127
    %v247 = vsel %vm239, %v58, %v129
    %v248 = vsel %vm239, %v59, %v131
    %v249 = vsel %vm239, %v60, %v133
    %v250 = vsel %vm239, %v61, %v135
    %v251 = vsel %vm239, %v62, %v137
    %v252 = vsel %vm239, %v63, %v139
    %v253 = vsel %vm239, %v64, %v141
    %v254 = vsel %vm239, %v65, %v143
    %v255 = vsel %vm239, %v66, %v145
    %vm256 = vcmask 64512
    %v257 = vsel %vm256, %v240, %v192
    %v258 = vsel %vm256, %v241, %v194
    %v259 = vsel %vm256, %v242, %v196
    %v260 = vsel %vm256, %v243, %v198
    %v261 = vsel %vm256, %v244, %v200
    %v262 = vsel %vm256, %v245, %v202
    %v263 = vsel %vm256, %v246, %v204
    %v264 = vsel %vm256, %v247, %v206
    %v265 = vsel %vm256, %v248, %v208
    %v266 = vsel %vm256, %v249, %v210
    %v267 = vsel %vm256, %v250, %v212
    %v268 = vsel %vm256, %v251, %v214
    %v269 = vsel %vm256, %v252, %v216
    %v270 = vsel %vm256, %v253, %v218
    %v271 = vsel %vm256, %v254, %v220
    %v272 = vsel %vm256, %v255, %v222
    %v277 = vrot.slane %v261, 2
    %v278 = vrot.slane %v262, 2
    %v279 = vsel %vm162, %v277, %v278
    %v280 = vrot.slane %v263, 2
    %v281 = vsel %vm162, %v278, %v280
    %v282 = vrot.slane %v264, 2
    %v283 = vsel %vm162, %v280, %v282
    %vm290 = vcmask 1043456
    %v291 = vrot.slane %v265, 4
    %v292 = vrot.slane %v266, 4
    %v293 = vsel %vm290, %v291, %v292
    %v294 = vrot.slane %v267, 4
    %v295 = vsel %vm290, %v292, %v294
    %v296 = vrot.slane %v268, 4
    %v297 = vsel %vm290, %v294, %v296
    %vm304 = vcmask 1041408
    %v305 = vrot.slane %v269, 6
    %v306 = vrot.slane %v270, 6
    %v307 = vsel %vm304, %v305, %v306
    %v308 = vrot.slane %v271, 6
    %v309 = vsel %vm304, %v306, %v308
    %v310 = vrot.slane %v272, 6
    %v311 = vsel %vm304, %v308, %v310
    %v313 = vsel %vm162, %v260, %v277
    %v314 = vsel %vm290, %v282, %v291
    %v315 = vsel %vm304, %v296, %v305
    %v316 = vld [vmem:[%s2] sm:$0x1]
    %v318 = vlaneseq
    %v319 = vshrl.u32 %v318, 7
    %v320 = vsub.s32 0, %v319
    %v321 = vrot.slane %v316, %v320
    %vm323 = vcmask 97280
    %v325 = vsel %vm323, %v257, 0
    %v328 = vsel %vm323, %v258, 0
    %v331 = vsel %vm323, %v259, 0
    %v334 = vsel %vm323, %v313, 0
    %v336 = vsel %vm323, %v279, 0
    %v338 = vsel %vm323, %v281, 0
    %v340 = vsel %vm323, %v283, 0
    %v343 = vsel %vm323, %v314, 0
    %v345 = vsel %vm323, %v293, 0
    %v347 = vsel %vm323, %v295, 0
    %v349 = vsel %vm323, %v297, 0
    %v352 = vsel %vm323, %v315, 0
    %v354 = vsel %vm323, %v307, 0
    %v356 = vsel %vm323, %v309, 0
    %v358 = vsel %vm323, %v311, 0
    %v361 = vsel %vm290, %v68, 0
    %363 = vmatprep.subr.mxu0 0.0
    %364 = vmatpush1.msra.mxu0 %v67
    %365 = vmatprep.subr.mxu0 0.0
    %366 = vmatpush1.msra.mxu0 %v361
    %367 = vmatprep.subr.mxu0 0.0
    %368 = vmatpush1.msra.mxu0 0.0
    %369 = vmatprep.subr.mxu0 0.0
    %370 = vmatpush1.msra.mxu0 0.0
    %371 = vmatprep.subr.mxu0 0.0
    %372 = vmatpush1.msra.mxu0 0.0
    %373 = vmatprep.subr.mxu0 0.0
    %374 = vmatpush1.msra.mxu0 0.0
    %375 = vmatprep.subr.mxu0 0.0
    %376 = vmatpush1.msra.mxu0 0.0
    %377 = vmatprep.subr.mxu0 0.0
    %378 = vmatpush1.msra.mxu0 0.0
    %379 = vmatprep.subr.mxu0 0.0
    %380 = vmatpush1.msra.mxu0 0.0
    %381 = vmatprep.subr.mxu0 0.0
    %382 = vmatpush1.msra.mxu0 0.0
    %383 = vmatprep.subr.mxu0 0.0
    %384 = vmatpush1.msra.mxu0 0.0
    %385 = vmatprep.subr.mxu0 0.0
    %386 = vmatpush1.msra.mxu0 0.0
    %387 = vmatprep.subr.mxu0 0.0
    %388 = vmatpush1.msra.mxu0 0.0
    %389 = vmatprep.subr.mxu0 0.0
    %390 = vmatpush1.msra.mxu0 0.0
    %391 = vmatprep.subr.mxu0 0.0
    %392 = vmatpush1.msra.mxu0 0.0
    %393 = vmatprep.subr.mxu0 0.0
    %394 = vmatpush1.msra.mxu0 0.0
    %395 = vmatprep.subr.mxu0 0.0
    %396 = vmatpush1.msra.mxu0 0.0
    %397 = vmatprep.subr.mxu0 0.0
    %398 = vmatpush1.msra.mxu0 0.0
    %399 = vmatprep.subr.mxu0 0.0
    %400 = vmatpush1.msra.mxu0 0.0
    %401 = vmatprep.subr.mxu0 0.0
    %402 = vmatpush1.msra.mxu0 0.0
    %403 = vmatprep.subr.mxu0 0.0
    %404 = vmatpush1.msra.mxu0 0.0
    %405 = vmatprep.subr.mxu0 0.0
    %406 = vmatpush1.msra.mxu0 0.0
    %407 = vmatprep.subr.mxu0 0.0
    %408 = vmatpush1.msra.mxu0 0.0
    %409 = vmatprep.subr.mxu0 0.0
    %410 = vmatpush1.msra.mxu0 0.0
    %411 = vmatprep.subr.mxu0 0.0
    %412 = vmatpush1.msra.mxu0 0.0
    %413 = vmatprep.subr.mxu0 0.0
    %414 = vmatpush1.msra.mxu0 0.0
    %415 = vmatprep.subr.mxu0 0.0
    %416 = vmatpush1.msra.mxu0 0.0
    %417 = vmatprep.subr.mxu0 0.0
    %418 = vmatpush1.msra.mxu0 0.0
    %419 = vmatprep.subr.mxu0 0.0
    %420 = vmatpush1.msra.mxu0 0.0
    %421 = vmatprep.subr.mxu0 0.0
    %422 = vmatpush1.msra.mxu0 0.0
    %423 = vmatprep.subr.mxu0 0.0
    %424 = vmatpush1.msra.mxu0 0.0
    %425 = vmatprep.subr.mxu0 0.0
    %426 = vmatpush1.msra.mxu0 0.0
    %427 = vmatprep.mubr.f32.mxu0 0.0
    %428 = vmatmul.mubr.f32.gmra.mrb[0].mxu0 %v325
    %v429 = vpop.f32.mrb[0].mxu0
    %v430 = vadd.f32 %v321, %v429
    %v431 = vpop.f32.mrb[0].mxu0
    %432 = vmatprep.mubr.f32.mxu0 0.0
    %433 = vmatmul.mubr.f32.gmra.mrb[0].mxu0 %v328
    %v434 = vpop.f32.mrb[0].mxu0
    %v435 = vadd.f32 %v321, %v434
    %v436 = vpop.f32.mrb[0].mxu0
    %437 = vmatprep.mubr.f32.mxu0 0.0
    %438 = vmatmul.mubr.f32.gmra.mrb[0].mxu0 %v331
    %v439 = vpop.f32.mrb[0].mxu0
    %v440 = vadd.f32 %v321, %v439
    %v441 = vpop.f32.mrb[0].mxu0
    %442 = vmatprep.mubr.f32.mxu0 0.0
    %443 = vmatmul.mubr.f32.gmra.mrb[0].mxu0 %v334
    %v444 = vpop.f32.mrb[0].mxu0
    %v445 = vadd.f32 %v321, %v444
    %v446 = vpop.f32.mrb[0].mxu0
    %447 = vmatprep.mubr.f32.mxu0 0.0
    %448 = vmatmul.mubr.f32.gmra.mrb[0].mxu0 %v336
    %v449 = vpop.f32.mrb[0].mxu0
    %v450 = vadd.f32 %v321, %v449
    %v451 = vpop.f32.mrb[0].mxu0
    %452 = vmatprep.mubr.f32.mxu0 0.0
    %453 = vmatmul.mubr.f32.gmra.mrb[0].mxu0 %v338
    %v454 = vpop.f32.mrb[0].mxu0
    %v455 = vadd.f32 %v321, %v454
    %v456 = vpop.f32.mrb[0].mxu0
    %457 = vmatprep.mubr.f32.mxu0 0.0
    %458 = vmatmul.mubr.f32.gmra.mrb[0].mxu0 %v340
    %v459 = vpop.f32.mrb[0].mxu0
    %v460 = vadd.f32 %v321, %v459
    %v461 = vpop.f32.mrb[0].mxu0
    %462 = vmatprep.mubr.f32.mxu0 0.0
    %463 = vmatmul.mubr.f32.gmra.mrb[0].mxu0 %v343
    %v464 = vpop.f32.mrb[0].mxu0
    %v465 = vadd.f32 %v321, %v464
    %v466 = vpop.f32.mrb[0].mxu0
    %467 = vmatprep.mubr.f32.mxu0 0.0
    %468 = vmatmul.mubr.f32.gmra.mrb[0].mxu0 %v345
    %v469 = vpop.f32.mrb[0].mxu0
    %v470 = vadd.f32 %v321, %v469
    %v471 = vpop.f32.mrb[0].mxu0
    %472 = vmatprep.mubr.f32.mxu0 0.0
    %473 = vmatmul.mubr.f32.gmra.mrb[0].mxu0 %v347
    %v474 = vpop.f32.mrb[0].mxu0
    %v475 = vadd.f32 %v321, %v474
    %v476 = vpop.f32.mrb[0].mxu0
    %477 = vmatprep.mubr.f32.mxu0 0.0
    %478 = vmatmul.mubr.f32.gmra.mrb[0].mxu0 %v349
    %v479 = vpop.f32.mrb[0].mxu0
    %v480 = vadd.f32 %v321, %v479
    %v481 = vpop.f32.mrb[0].mxu0
    %482 = vmatprep.mubr.f32.mxu0 0.0
    %483 = vmatmul.mubr.f32.gmra.mrb[0].mxu0 %v352
    %v484 = vpop.f32.mrb[0].mxu0
    %v485 = vadd.f32 %v321, %v484
    %v486 = vpop.f32.mrb[0].mxu0
    %487 = vmatprep.mubr.f32.mxu0 0.0
    %488 = vmatmul.mubr.f32.gmra.mrb[0].mxu0 %v354
    %v489 = vpop.f32.mrb[0].mxu0
    %v490 = vadd.f32 %v321, %v489
    %v491 = vpop.f32.mrb[0].mxu0
    %492 = vmatprep.mubr.f32.mxu0 0.0
    %493 = vmatmul.mubr.f32.gmra.mrb[0].mxu0 %v356
    %v494 = vpop.f32.mrb[0].mxu0
    %v495 = vadd.f32 %v321, %v494
    %v496 = vpop.f32.mrb[0].mxu0
    %497 = vmatprep.mubr.f32.mxu0 0.0
    %498 = vmatmul.mubr.f32.gmra.mrb[0].mxu0 %v358
    %v499 = vpop.f32.mrb[0].mxu0
    %v500 = vadd.f32 %v321, %v499
    %v501 = vpop.f32.mrb[0].mxu0
    %502 = vdwg.mxu0
    %v503 = vsel %vm256, %v430, 0.0
    %v504 = vsel %vm256, %v435, 0.0
    %v505 = vadd.f32 %v503, %v504
    %v506 = vsel %vm256, %v440, 0.0
    %v507 = vadd.f32 %v505, %v506
    %v508 = vsel %vm256, %v445, 0.0
    %v509 = vadd.f32 %v507, %v508
    %v510 = vsel %vm256, %v450, 0.0
    %v511 = vadd.f32 %v509, %v510
    %v512 = vsel %vm256, %v455, 0.0
    %v513 = vadd.f32 %v511, %v512
    %v514 = vsel %vm256, %v460, 0.0
    %v515 = vadd.f32 %v513, %v514
    %v516 = vsel %vm256, %v465, 0.0
    %v517 = vadd.f32 %v515, %v516
    %v518 = vsel %vm256, %v470, 0.0
    %v519 = vadd.f32 %v517, %v518
    %v520 = vsel %vm256, %v475, 0.0
    %v521 = vadd.f32 %v519, %v520
    %v522 = vsel %vm256, %v480, 0.0
    %v523 = vadd.f32 %v521, %v522
    %v524 = vsel %vm256, %v485, 0.0
    %v525 = vadd.f32 %v523, %v524
    %v526 = vsel %vm256, %v490, 0.0
    %v527 = vadd.f32 %v525, %v526
    %v528 = vsel %vm256, %v495, 0.0
    %v529 = vadd.f32 %v527, %v528
    %v530 = vsel %vm256, %v500, 0.0
    %v531 = vadd.f32 %v529, %v530
    %v532 = vrot.slane %v531, 4
    %v533 = vadd.f32 %v531, %v532
    %v534 = vrot.slane %v533, 2
    %v535 = vadd.f32 %v533, %v534
    %v536 = vrot.slane %v535, 1
    %v537 = vadd.f32 %v535, %v536
    %v538 = vmul.f32 %v537, 0.008333334
    %v539 = vsub.f32 %v430, %v538
    %v540 = vsub.f32 %v435, %v538
    %v541 = vsub.f32 %v440, %v538
    %v542 = vsub.f32 %v445, %v538
    %v543 = vsub.f32 %v450, %v538
    %v544 = vsub.f32 %v455, %v538
    %v545 = vsub.f32 %v460, %v538
    %v546 = vsub.f32 %v465, %v538
    %v547 = vsub.f32 %v470, %v538
    %v548 = vsub.f32 %v475, %v538
    %v549 = vsub.f32 %v480, %v538
    %v550 = vsub.f32 %v485, %v538
    %v551 = vsub.f32 %v490, %v538
    %v552 = vsub.f32 %v495, %v538
    %v553 = vsub.f32 %v500, %v538
    %v554 = vmul.f32 %v539, %v539
    %v555 = vmul.f32 %v540, %v540
    %v556 = vmul.f32 %v541, %v541
    %v557 = vmul.f32 %v542, %v542
    %v558 = vmul.f32 %v543, %v543
    %v559 = vmul.f32 %v544, %v544
    %v560 = vmul.f32 %v545, %v545
    %v561 = vmul.f32 %v546, %v546
    %v562 = vmul.f32 %v547, %v547
    %v563 = vmul.f32 %v548, %v548
    %v564 = vmul.f32 %v549, %v549
    %v565 = vmul.f32 %v550, %v550
    %v566 = vmul.f32 %v551, %v551
    %v567 = vmul.f32 %v552, %v552
    %v568 = vmul.f32 %v553, %v553
    %v569 = vsel %vm256, %v554, 0.0
    %v570 = vsel %vm256, %v555, 0.0
    %v571 = vadd.f32 %v569, %v570
    %v572 = vsel %vm256, %v556, 0.0
    %v573 = vadd.f32 %v571, %v572
    %v574 = vsel %vm256, %v557, 0.0
    %v575 = vadd.f32 %v573, %v574
    %v576 = vsel %vm256, %v558, 0.0
    %v577 = vadd.f32 %v575, %v576
    %v578 = vsel %vm256, %v559, 0.0
    %v579 = vadd.f32 %v577, %v578
    %v580 = vsel %vm256, %v560, 0.0
    %v581 = vadd.f32 %v579, %v580
    %v582 = vsel %vm256, %v561, 0.0
    %v583 = vadd.f32 %v581, %v582
    %v584 = vsel %vm256, %v562, 0.0
    %v585 = vadd.f32 %v583, %v584
    %v586 = vsel %vm256, %v563, 0.0
    %v587 = vadd.f32 %v585, %v586
    %v588 = vsel %vm256, %v564, 0.0
    %v589 = vadd.f32 %v587, %v588
    %v590 = vsel %vm256, %v565, 0.0
    %v591 = vadd.f32 %v589, %v590
    %v592 = vsel %vm256, %v566, 0.0
    %v593 = vadd.f32 %v591, %v592
    %v594 = vsel %vm256, %v567, 0.0
    %v595 = vadd.f32 %v593, %v594
    %v596 = vsel %vm256, %v568, 0.0
    %v597 = vadd.f32 %v595, %v596
    %v598 = vrot.slane %v597, 4
    %v599 = vadd.f32 %v597, %v598
    %v600 = vrot.slane %v599, 2
    %v601 = vadd.f32 %v599, %v600
    %v602 = vrot.slane %v601, 1
    %v603 = vadd.f32 %v601, %v602
    %v604 = vmul.f32 %v603, 0.008333334
    %v605 = vadd.f32 %v604, 1e-05
    %v606 = vrsqrt.pop %v605
    %v607 = vmul.f32 %v539, %v606
    %v608 = vmul.f32 %v540, %v606
    %v609 = vmul.f32 %v541, %v606
    %v610 = vmul.f32 %v542, %v606
    %v611 = vmul.f32 %v543, %v606
    %v612 = vmul.f32 %v544, %v606
    %v613 = vmul.f32 %v545, %v606
    %v614 = vmul.f32 %v546, %v606
    %v615 = vmul.f32 %v547, %v606
    %v616 = vmul.f32 %v548, %v606
    %v617 = vmul.f32 %v549, %v606
    %v618 = vmul.f32 %v550, %v606
    %v619 = vmul.f32 %v551, %v606
    %v620 = vmul.f32 %v552, %v606
    %v621 = vmul.f32 %v553, %v606
    %v622 = vld [vmem:[%s3] sm:$0x1]
    %v624 = vlaneseq
    %v625 = vshrl.u32 %v624, 7
    %v626 = vsub.s32 0, %v625
    %v627 = vrot.slane %v622, %v626
    %v629 = vmul.f32 %v607, %v627
    %v630 = vmul.f32 %v608, %v627
    %v631 = vmul.f32 %v609, %v627
    %v632 = vmul.f32 %v610, %v627
    %v633 = vmul.f32 %v611, %v627
    %v634 = vmul.f32 %v612, %v627
    %v635 = vmul.f32 %v613, %v627
    %v636 = vmul.f32 %v614, %v627
    %v637 = vmul.f32 %v615, %v627
    %v638 = vmul.f32 %v616, %v627
    %v639 = vmul.f32 %v617, %v627
    %v640 = vmul.f32 %v618, %v627
    %v641 = vmul.f32 %v619, %v627
    %v642 = vmul.f32 %v620, %v627
    %v643 = vmul.f32 %v621, %v627
    %v644 = vld [vmem:[%s4] sm:$0x1]
    %v646 = vlaneseq
    %v647 = vshrl.u32 %v646, 7
    %v648 = vsub.s32 0, %v647
    %v649 = vrot.slane %v644, %v648
    %v651 = vadd.f32 %v629, %v649
    %v652 = vadd.f32 %v630, %v649
    %v653 = vadd.f32 %v631, %v649
    %v654 = vadd.f32 %v632, %v649
    %v655 = vadd.f32 %v633, %v649
    %v656 = vadd.f32 %v634, %v649
    %v657 = vadd.f32 %v635, %v649
    %v658 = vadd.f32 %v636, %v649
    %v659 = vadd.f32 %v637, %v649
    %v660 = vadd.f32 %v638, %v649
    %v661 = vadd.f32 %v639, %v649
    %v662 = vadd.f32 %v640, %v649
    %v663 = vadd.f32 %v641, %v649
    %v664 = vadd.f32 %v642, %v649
    %v665 = vadd.f32 %v643, %v649
    %vm666 = vcmp.gt.f32.partialorder %v651, 0.0
    %vm667 = vcmp.gt.f32.partialorder %v652, 0.0
    %vm668 = vcmp.gt.f32.partialorder %v653, 0.0
    %vm669 = vcmp.gt.f32.partialorder %v654, 0.0
    %vm670 = vcmp.gt.f32.partialorder %v655, 0.0
    %vm671 = vcmp.gt.f32.partialorder %v656, 0.0
    %vm672 = vcmp.gt.f32.partialorder %v657, 0.0
    %vm673 = vcmp.gt.f32.partialorder %v658, 0.0
    %vm674 = vcmp.gt.f32.partialorder %v659, 0.0
    %vm675 = vcmp.gt.f32.partialorder %v660, 0.0
    %vm676 = vcmp.gt.f32.partialorder %v661, 0.0
    %vm677 = vcmp.gt.f32.partialorder %v662, 0.0
    %vm678 = vcmp.gt.f32.partialorder %v663, 0.0
    %vm679 = vcmp.gt.f32.partialorder %v664, 0.0
    %vm680 = vcmp.gt.f32.partialorder %v665, 0.0
    %v681 = vmin.f32 %v651, 0.0
    %v682 = vmin.f32 %v652, 0.0
    %v683 = vmin.f32 %v653, 0.0
    %v684 = vmin.f32 %v654, 0.0
    %v685 = vmin.f32 %v655, 0.0
    %v686 = vmin.f32 %v656, 0.0
    %v687 = vmin.f32 %v657, 0.0
    %v688 = vmin.f32 %v658, 0.0
    %v689 = vmin.f32 %v659, 0.0
    %v690 = vmin.f32 %v660, 0.0
    %v691 = vmin.f32 %v661, 0.0
    %v692 = vmin.f32 %v662, 0.0
    %v693 = vmin.f32 %v663, 0.0
    %v694 = vmin.f32 %v664, 0.0
    %v695 = vmin.f32 %v665, 0.0
    %v696 = vmul.f32 %v681, 1.442695
    %v697 = vpow.pop %v696
    %v698 = vmul.f32 %v682, 1.442695
    %v699 = vpow.pop %v698
    %v700 = vmul.f32 %v683, 1.442695
    %v701 = vpow.pop %v700
    %v702 = vmul.f32 %v684, 1.442695
    %v703 = vpow.pop %v702
    %v704 = vmul.f32 %v685, 1.442695
    %v705 = vpow.pop %v704
    %v706 = vmul.f32 %v686, 1.442695
    %v707 = vpow.pop %v706
    %v708 = vmul.f32 %v687, 1.442695
    %v709 = vpow.pop %v708
    %v710 = vmul.f32 %v688, 1.442695
    %v711 = vpow.pop %v710
    %v712 = vmul.f32 %v689, 1.442695
    %v713 = vpow.pop %v712
    %v714 = vmul.f32 %v690, 1.442695
    %v715 = vpow.pop %v714
    %v716 = vmul.f32 %v691, 1.442695
    %v717 = vpow.pop %v716
    %v718 = vmul.f32 %v692, 1.442695
    %v719 = vpow.pop %v718
    %v720 = vmul.f32 %v693, 1.442695
    %v721 = vpow.pop %v720
    %v722 = vmul.f32 %v694, 1.442695
    %v723 = vpow.pop %v722
    %v724 = vmul.f32 %v695, 1.442695
    %v725 = vpow.pop %v724
    %v726 = vsub.f32 %v697, 1.0
    %v727 = vsub.f32 %v699, 1.0
    %v728 = vsub.f32 %v701, 1.0
    %v729 = vsub.f32 %v703, 1.0
    %v730 = vsub.f32 %v705, 1.0
    %v731 = vsub.f32 %v707, 1.0
    %v732 = vsub.f32 %v709, 1.0
    %v733 = vsub.f32 %v711, 1.0
    %v734 = vsub.f32 %v713, 1.0
    %v735 = vsub.f32 %v715, 1.0
    %v736 = vsub.f32 %v717, 1.0
    %v737 = vsub.f32 %v719, 1.0
    %v738 = vsub.f32 %v721, 1.0
    %v739 = vsub.f32 %v723, 1.0
    %v740 = vsub.f32 %v725, 1.0
    %v741 = vsel %vm666, %v651, %v726
    %v742 = vsel %vm667, %v652, %v727
    %v743 = vsel %vm668, %v653, %v728
    %v744 = vsel %vm669, %v654, %v729
    %v745 = vsel %vm670, %v655, %v730
    %v746 = vsel %vm671, %v656, %v731
    %v747 = vsel %vm672, %v657, %v732
    %v748 = vsel %vm673, %v658, %v733
    %v749 = vsel %vm674, %v659, %v734
    %v750 = vsel %vm675, %v660, %v735
    %v751 = vsel %vm676, %v661, %v736
    %v752 = vsel %vm677, %v662, %v737
    %v753 = vsel %vm678, %v663, %v738
    %v754 = vsel %vm679, %v664, %v739
    %v755 = vsel %vm680, %v665, %v740
    %v761 = vrot.slane %v744, 6
    %v762 = vrot.slane %v745, 6
    %v763 = vsel %vm304, %v761, %v762
    %v764 = vrot.slane %v746, 6
    %v765 = vsel %vm304, %v762, %v764
    %v766 = vrot.slane %v747, 6
    %v767 = vsel %vm304, %v764, %v766
    %v768 = vrot.slane %v748, 6
    %v769 = vsel %vm304, %v766, %v768
    %v778 = vrot.slane %v748, 4
    %v779 = vrot.slane %v749, 4
    %v780 = vsel %vm290, %v778, %v779
    %v781 = vrot.slane %v750, 4
    %v782 = vsel %vm290, %v779, %v781
    %v783 = vrot.slane %v751, 4
    %v784 = vsel %vm290, %v781, %v783
    %v785 = vrot.slane %v752, 4
    %v786 = vsel %vm290, %v783, %v785
    %v794 = vrot.slane %v752, 2
    %v795 = vrot.slane %v753, 2
    %v796 = vsel %vm162, %v794, %v795
    %v797 = vrot.slane %v754, 2
    %v798 = vsel %vm162, %v795, %v797
    %v799 = vrot.slane %v755, 2
    %v800 = vsel %vm162, %v797, %v799
    %v805 = vadd.f32 %v741, 0.0
    %v806 = vadd.f32 %v763, 0.0
    %v807 = vadd.f32 %v780, 0.0
    %v808 = vadd.f32 %v796, 0.0
    %v810 = vrot.slane %v741, 1
    %v811 = vrot.slane %v763, 1
    %v812 = vrot.slane %v780, 1
    %v813 = vrot.slane %v796, 1
    %v818 = vadd.f32 %v805, %v810
    %v819 = vadd.f32 %v806, %v811
    %v820 = vadd.f32 %v807, %v812
    %v821 = vadd.f32 %v808, %v813
    %v822 = vmul.f32 %v818, 0.5
    %v823 = vmul.f32 %v819, 0.5
    %v824 = vmul.f32 %v820, 0.5
    %v825 = vmul.f32 %v821, 0.5
    %v826 = vadd.f32 %v742, 0.0
    %v827 = vadd.f32 %v765, 0.0
    %v828 = vadd.f32 %v782, 0.0
    %v829 = vadd.f32 %v798, 0.0
    %v831 = vrot.slane %v742, 1
    %v832 = vrot.slane %v765, 1
    %v833 = vrot.slane %v782, 1
    %v834 = vrot.slane %v798, 1
    %v839 = vadd.f32 %v826, %v831
    %v840 = vadd.f32 %v827, %v832
    %v841 = vadd.f32 %v828, %v833
    %v842 = vadd.f32 %v829, %v834
    %v843 = vmul.f32 %v839, 0.5
    %v844 = vmul.f32 %v840, 0.5
    %v845 = vmul.f32 %v841, 0.5
    %v846 = vmul.f32 %v842, 0.5
    %v847 = vadd.f32 %v743, 0.0
    %v848 = vadd.f32 %v767, 0.0
    %v849 = vadd.f32 %v784, 0.0
    %v850 = vadd.f32 %v800, 0.0
    %v852 = vrot.slane %v743, 1
    %v853 = vrot.slane %v767, 1
    %v854 = vrot.slane %v784, 1
    %v855 = vrot.slane %v800, 1
    %v860 = vadd.f32 %v847, %v852
    %v861 = vadd.f32 %v848, %v853
    %v862 = vadd.f32 %v849, %v854
    %v863 = vadd.f32 %v850, %v855
    %v864 = vmul.f32 %v860, 0.5
    %v865 = vmul.f32 %v861, 0.5
    %v866 = vmul.f32 %v862, 0.5
    %v867 = vmul.f32 %v863, 0.5
    %v868 = vadd.f32 %v744, 0.0
    %v869 = vadd.f32 %v769, 0.0
    %v870 = vadd.f32 %v786, 0.0
    %v871 = vadd.f32 %v799, 0.0
    %v872 = vrot.slane %v744, 1
    %v873 = vrot.slane %v769, 1
    %v874 = vrot.slane %v786, 1
    %v875 = vrot.slane %v799, 1
    %v880 = vadd.f32 %v868, %v872
    %v881 = vadd.f32 %v869, %v873
    %v882 = vadd.f32 %v870, %v874
    %v883 = vadd.f32 %v871, %v875
    %v884 = vmul.f32 %v880, 0.5
    %v885 = vmul.f32 %v881, 0.5
    %v886 = vmul.f32 %v882, 0.5
    %v887 = vmul.f32 %v883, 0.5
    %v892 = vrot.slane %v822, 1
    %v893 = vrot.slane %v823, 1
    %v894 = vrot.slane %v824, 1
    %v895 = vrot.slane %v825, 1
    %v900 = vrot.slane %v822, 2
    %v901 = vrot.slane %v823, 2
    %v902 = vrot.slane %v824, 2
    %v903 = vrot.slane %v825, 2
    %v908 = vrot.slane %v822, 3
    %v909 = vrot.slane %v823, 3
    %v910 = vrot.slane %v824, 3
    %v911 = vrot.slane %v825, 3
    %v920 = vrot.slane %v843, 4
    %v921 = vrot.slane %v844, 4
    %v922 = vrot.slane %v845, 4
    %v923 = vrot.slane %v846, 4
    %v928 = vrot.slane %v843, 5
    %v929 = vrot.slane %v844, 5
    %v930 = vrot.slane %v845, 5
    %v931 = vrot.slane %v846, 5
    %v936 = vrot.slane %v843, 6
    %v937 = vrot.slane %v844, 6
    %v938 = vrot.slane %v845, 6
    %v939 = vrot.slane %v846, 6
    %v944 = vrot.slane %v843, 7
    %v945 = vrot.slane %v844, 7
    %v946 = vrot.slane %v845, 7
    %v947 = vrot.slane %v846, 7
    %v956 = vrot.slane %v864, 1
    %v957 = vrot.slane %v865, 1
    %v958 = vrot.slane %v866, 1
    %v959 = vrot.slane %v867, 1
    %v964 = vrot.slane %v864, 2
    %v965 = vrot.slane %v865, 2
    %v966 = vrot.slane %v866, 2
    %v967 = vrot.slane %v867, 2
    %v972 = vrot.slane %v864, 3
    %v973 = vrot.slane %v865, 3
    %v974 = vrot.slane %v866, 3
    %v975 = vrot.slane %v867, 3
    %v984 = vrot.slane %v884, 4
    %v985 = vrot.slane %v885, 4
    %v986 = vrot.slane %v886, 4
    %v987 = vrot.slane %v887, 4
    %v992 = vrot.slane %v884, 5
    %v993 = vrot.slane %v885, 5
    %v994 = vrot.slane %v886, 5
    %v995 = vrot.slane %v887, 5
    %v1000 = vrot.slane %v884, 6
    %v1001 = vrot.slane %v885, 6
    %v1002 = vrot.slane %v886, 6
    %v1003 = vrot.slane %v887, 6
    %vm1008 = vcmask 1040384
    %v1009 = vsel %vm1008, %v822, %v892
    %v1010 = vsel %vm1008, %v823, %v893
    %v1011 = vsel %vm1008, %v824, %v894
    %v1012 = vsel %vm1008, %v825, %v895
    %v1013 = vsel %vm304, %v1009, %v900
    %v1014 = vsel %vm304, %v1010, %v901
    %v1015 = vsel %vm304, %v1011, %v902
    %v1016 = vsel %vm304, %v1012, %v903
    %vm1017 = vcmask 1042432
    %v1018 = vsel %vm1017, %v1013, %v908
    %v1019 = vsel %vm1017, %v1014, %v909
    %v1020 = vsel %vm1017, %v1015, %v910
    %v1021 = vsel %vm1017, %v1016, %v911
    %v1022 = vsel %vm290, %v1018, %v920
    %v1023 = vsel %vm290, %v1019, %v921
    %v1024 = vsel %vm290, %v1020, %v922
    %v1025 = vsel %vm290, %v1021, %v923
    %vm1026 = vcmask 1044480
    %v1027 = vsel %vm1026, %v1022, %v928
    %v1028 = vsel %vm1026, %v1023, %v929
    %v1029 = vsel %vm1026, %v1024, %v930
    %v1030 = vsel %vm1026, %v1025, %v931
    %v1031 = vsel %vm162, %v1027, %v936
    %v1032 = vsel %vm162, %v1028, %v937
    %v1033 = vsel %vm162, %v1029, %v938
    %v1034 = vsel %vm162, %v1030, %v939
    %v1035 = vsel %vm85, %v1031, %v944
    %v1036 = vsel %vm85, %v1032, %v945
    %v1037 = vsel %vm85, %v1033, %v946
    %v1038 = vsel %vm85, %v1034, %v947
    %v1039 = vsel %vm1008, %v864, %v956
    %v1040 = vsel %vm1008, %v865, %v957
    %v1041 = vsel %vm1008, %v866, %v958
    %v1042 = vsel %vm1008, %v867, %v959
    %v1043 = vsel %vm304, %v1039, %v964
    %v1044 = vsel %vm304, %v1040, %v965
    %v1045 = vsel %vm304, %v1041, %v966
    %v1046 = vsel %vm304, %v1042, %v967
    %v1047 = vsel %vm1017, %v1043, %v972
    %v1048 = vsel %vm1017, %v1044, %v973
    %v1049 = vsel %vm1017, %v1045, %v974
    %v1050 = vsel %vm1017, %v1046, %v975
    %v1051 = vsel %vm290, %v1047, %v984
    %v1052 = vsel %vm290, %v1048, %v985
    %v1053 = vsel %vm290, %v1049, %v986
    %v1054 = vsel %vm290, %v1050, %v987
    %v1055 = vsel %vm1026, %v1051, %v992
    %v1056 = vsel %vm1026, %v1052, %v993
    %v1057 = vsel %vm1026, %v1053, %v994
    %v1058 = vsel %vm1026, %v1054, %v995
    %v1059 = vsel %vm162, %v1055, %v1000
    %v1060 = vsel %vm162, %v1056, %v1001
    %v1061 = vsel %vm162, %v1057, %v1002
    %v1062 = vsel %vm162, %v1058, %v1003
    %v1063 = vld [vmem:[%s5] sm:$0xff]
    %v1064 = vld [vmem:[%s5 + $0x8] sm:$0xff]
    %v1065 = vld [vmem:[%s5 + $0x10] sm:$0xff]
    %v1074 = vrot.slane %v1035, 1
    %v1075 = vrot.slane %v1059, 1
    %v1076 = vsel %vm85, %v1074, %v1075
    %v1077 = vrot.slane %v1036, 1
    %v1078 = vrot.slane %v1060, 1
    %v1079 = vsel %vm85, %v1077, %v1078
    %v1080 = vrot.slane %v1037, 1
    %v1081 = vrot.slane %v1061, 1
    %v1082 = vsel %vm85, %v1080, %v1081
    %v1083 = vrot.slane %v1038, 1
    %v1084 = vrot.slane %v1062, 1
    %v1085 = vsel %vm85, %v1083, %v1084
    %1086 = vrot.lane.b32.xlu0 %v1076, 8
    %v1087 = vpop.permute.xlu0 %1086
    %1088 = vrot.lane.b32.xlu0 %v1075, 8
    %v1089 = vpop.permute.xlu0 %1088
    %1090 = vrot.lane.b32.xlu0 %v1079, 8
    %v1091 = vpop.permute.xlu0 %1090
    %1092 = vrot.lane.b32.xlu0 %v1078, 8
    %v1093 = vpop.permute.xlu0 %1092
    %1094 = vrot.lane.b32.xlu0 %v1082, 8
    %v1095 = vpop.permute.xlu0 %1094
    %1096 = vrot.lane.b32.xlu0 %v1081, 8
    %v1097 = vpop.permute.xlu0 %1096
    %1098 = vrot.lane.b32.xlu0 %v1085, 8
    %v1099 = vpop.permute.xlu0 %1098
    %1100 = vrot.lane.b32.xlu0 %v1084, 8
    %v1101 = vpop.permute.xlu0 %1100
    %v1110 = vrot.slane %v1035, 2
    %v1111 = vrot.slane %v1059, 2
    %v1112 = vsel %vm162, %v1110, %v1111
    %v1113 = vrot.slane %v1036, 2
    %v1114 = vrot.slane %v1060, 2
    %v1115 = vsel %vm162, %v1113, %v1114
    %v1116 = vrot.slane %v1037, 2
    %v1117 = vrot.slane %v1061, 2
    %v1118 = vsel %vm162, %v1116, %v1117
    %v1119 = vrot.slane %v1038, 2
    %v1120 = vrot.slane %v1062, 2
    %v1121 = vsel %vm162, %v1119, %v1120
    %1122 = vrot.lane.b32.xlu0 %v1112, 16
    %v1123 = vpop.permute.xlu0 %1122
    %1124 = vrot.lane.b32.xlu0 %v1111, 16
    %v1125 = vpop.permute.xlu0 %1124
    %1126 = vrot.lane.b32.xlu0 %v1115, 16
    %v1127 = vpop.permute.xlu0 %1126
    %1128 = vrot.lane.b32.xlu0 %v1114, 16
    %v1129 = vpop.permute.xlu0 %1128
    %1130 = vrot.lane.b32.xlu0 %v1118, 16
    %v1131 = vpop.permute.xlu0 %1130
    %1132 = vrot.lane.b32.xlu0 %v1117, 16
    %v1133 = vpop.permute.xlu0 %1132
    %1134 = vrot.lane.b32.xlu0 %v1121, 16
    %v1135 = vpop.permute.xlu0 %1134
    %1136 = vrot.lane.b32.xlu0 %v1120, 16
    %v1137 = vpop.permute.xlu0 %1136
    %v1146 = vsel %vm256, %v1035, %v1087
    %v1147 = vsel %vm256, %v1059, %v1089
    %v1148 = vsel %vm256, %v1036, %v1091
    %v1149 = vsel %vm256, %v1060, %v1093
    %v1150 = vsel %vm256, %v1037, %v1095
    %v1151 = vsel %vm256, %v1061, %v1097
    %v1152 = vsel %vm256, %v1038, %v1099
    %v1153 = vsel %vm256, %v1062, %v1101
    %vm1154 = vcmask 130048
    %v1155 = vsel %vm1154, %v1146, %v1123
    %v1156 = vsel %vm1154, %v1147, %v1125
    %v1157 = vsel %vm1154, %v1148, %v1127
    %v1158 = vsel %vm1154, %v1149, %v1129
    %v1159 = vsel %vm1154, %v1150, %v1131
    %v1160 = vsel %vm1154, %v1151, %v1133
    %v1161 = vsel %vm1154, %v1152, %v1135
    %v1162 = vsel %vm1154, %v1153, %v1137
    %v1165 = vrot.slane %v1157, 3
    %v1166 = vrot.slane %v1158, 3
    %v1167 = vsel %vm1026, %v1165, %v1166
    %v1172 = vrot.slane %v1159, 6
    %v1173 = vrot.slane %v1160, 6
    %v1174 = vsel %vm304, %v1172, %v1173
    %v1179 = vrot.slane %v1161, 1
    %v1180 = vrot.slane %v1162, 1
    %v1181 = vsel %vm85, %v1179, %v1180
    %v1183 = vsel %vm1026, %v1156, %v1165
    %v1184 = vsel %vm304, %v1166, %v1172
    %v1185 = vsel %vm85, %v1174, %v1179
    %v1186 = vld [vmem:[%s6] sm:$0x1]
    %v1188 = vlaneseq
    %v1189 = vshrl.u32 %v1188, 7
    %v1190 = vsub.s32 0, %v1189
    %v1191 = vrot.slane %v1186, %v1190
    %vm1193 = vcmask 195584
    %v1195 = vsel %vm1193, %v1155, 0
    %v1198 = vsel %vm1193, %v1183, 0
    %v1200 = vsel %vm1193, %v1167, 0
    %v1203 = vsel %vm1193, %v1184, 0
    %v1206 = vsel %vm1193, %v1185, 0
    %v1208 = vsel %vm1193, %v1181, 0
    %v1210 = vsel %vm1193, %v1180, 0
    %1212 = vmatprep.subr.mxu0 0.0
    %1213 = vmatpush1.msra.mxu0 %v1063
    %1214 = vmatprep.subr.mxu0 0.0
    %1215 = vmatpush1.msra.mxu0 %v1064
    %1216 = vmatprep.subr.mxu0 0.0
    %1217 = vmatpush1.msra.mxu0 %v1065
    %1218 = vmatprep.subr.mxu0 0.0
    %1219 = vmatpush1.msra.mxu0 0.0
    %1220 = vmatprep.subr.mxu0 0.0
    %1221 = vmatpush1.msra.mxu0 0.0
    %1222 = vmatprep.subr.mxu0 0.0
    %1223 = vmatpush1.msra.mxu0 0.0
    %1224 = vmatprep.subr.mxu0 0.0
    %1225 = vmatpush1.msra.mxu0 0.0
    %1226 = vmatprep.subr.mxu0 0.0
    %1227 = vmatpush1.msra.mxu0 0.0
    %1228 = vmatprep.subr.mxu0 0.0
    %1229 = vmatpush1.msra.mxu0 0.0
    %1230 = vmatprep.subr.mxu0 0.0
    %1231 = vmatpush1.msra.mxu0 0.0
    %1232 = vmatprep.subr.mxu0 0.0
    %1233 = vmatpush1.msra.mxu0 0.0
    %1234 = vmatprep.subr.mxu0 0.0
    %1235 = vmatpush1.msra.mxu0 0.0
    %1236 = vmatprep.subr.mxu0 0.0
    %1237 = vmatpush1.msra.mxu0 0.0
    %1238 = vmatprep.subr.mxu0 0.0
    %1239 = vmatpush1.msra.mxu0 0.0
    %1240 = vmatprep.subr.mxu0 0.0
    %1241 = vmatpush1.msra.mxu0 0.0
    %1242 = vmatprep.subr.mxu0 0.0
    %1243 = vmatpush1.msra.mxu0 0.0
    %1244 = vmatprep.subr.mxu0 0.0
    %1245 = vmatpush1.msra.mxu0 0.0
    %1246 = vmatprep.subr.mxu0 0.0
    %1247 = vmatpush1.msra.mxu0 0.0
    %1248 = vmatprep.subr.mxu0 0.0
    %1249 = vmatpush1.msra.mxu0 0.0
    %1250 = vmatprep.subr.mxu0 0.0
    %1251 = vmatpush1.msra.mxu0 0.0
    %1252 = vmatprep.subr.mxu0 0.0
    %1253 = vmatpush1.msra.mxu0 0.0
    %1254 = vmatprep.subr.mxu0 0.0
    %1255 = vmatpush1.msra.mxu0 0.0
    %1256 = vmatprep.subr.mxu0 0.0
    %1257 = vmatpush1.msra.mxu0 0.0
    %1258 = vmatprep.subr.mxu0 0.0
    %1259 = vmatpush1.msra.mxu0 0.0
    %1260 = vmatprep.subr.mxu0 0.0
    %1261 = vmatpush1.msra.mxu0 0.0
    %1262 = vmatprep.subr.mxu0 0.0
    %1263 = vmatpush1.msra.mxu0 0.0
    %1264 = vmatprep.subr.mxu0 0.0
    %1265 = vmatpush1.msra.mxu0 0.0
    %1266 = vmatprep.subr.mxu0 0.0
    %1267 = vmatpush1.msra.mxu0 0.0
    %1268 = vmatprep.subr.mxu0 0.0
    %1269 = vmatpush1.msra.mxu0 0.0
    %1270 = vmatprep.subr.mxu0 0.0
    %1271 = vmatpush1.msra.mxu0 0.0
    %1272 = vmatprep.subr.mxu0 0.0
    %1273 = vmatpush1.msra.mxu0 0.0
    %1274 = vmatprep.subr.mxu0 0.0
    %1275 = vmatpush1.msra.mxu0 0.0
    %1276 = vmatprep.mubr.f32.mxu0 0.0
    %1277 = vmatmul.mubr.f32.gmra.mrb[0].mxu0 %v1195
    %v1278 = vpop.f32.mrb[0].mxu0
    %v1279 = vadd.f32 %v1191, %v1278
    %v1280 = vpop.f32.mrb[0].mxu0
    %1281 = vmatprep.mubr.f32.mxu0 0.0
    %1282 = vmatmul.mubr.f32.gmra.mrb[0].mxu0 %v1198
    %v1283 = vpop.f32.mrb[0].mxu0
    %v1284 = vadd.f32 %v1191, %v1283
    %v1285 = vpop.f32.mrb[0].mxu0
    %1286 = vmatprep.mubr.f32.mxu0 0.0
    %1287 = vmatmul.mubr.f32.gmra.mrb[0].mxu0 %v1200
    %v1288 = vpop.f32.mrb[0].mxu0
    %v1289 = vadd.f32 %v1191, %v1288
    %v1290 = vpop.f32.mrb[0].mxu0
    %1291 = vmatprep.mubr.f32.mxu0 0.0
    %1292 = vmatmul.mubr.f32.gmra.mrb[0].mxu0 %v1203
    %v1293 = vpop.f32.mrb[0].mxu0
    %v1294 = vadd.f32 %v1191, %v1293
    %v1295 = vpop.f32.mrb[0].mxu0
    %1296 = vmatprep.mubr.f32.mxu0 0.0
    %1297 = vmatmul.mubr.f32.gmra.mrb[0].mxu0 %v1206
    %v1298 = vpop.f32.mrb[0].mxu0
    %v1299 = vadd.f32 %v1191, %v1298
    %v1300 = vpop.f32.mrb[0].mxu0
    %1301 = vmatprep.mubr.f32.mxu0 0.0
    %1302 = vmatmul.mubr.f32.gmra.mrb[0].mxu0 %v1208
    %v1303 = vpop.f32.mrb[0].mxu0
    %v1304 = vadd.f32 %v1191, %v1303
    %v1305 = vpop.f32.mrb[0].mxu0
    %1306 = vmatprep.mubr.f32.mxu0 0.0
    %1307 = vmatmul.mubr.f32.gmra.mrb[0].mxu0 %v1210
    %v1308 = vpop.f32.mrb[0].mxu0
    %v1309 = vadd.f32 %v1191, %v1308
    %v1310 = vpop.f32.mrb[0].mxu0
    %1311 = vdwg.mxu0
    %v1312 = vsel %vm1154, %v1279, 0.0
    %v1313 = vsel %vm1154, %v1284, 0.0
    %v1314 = vadd.f32 %v1312, %v1313
    %v1315 = vsel %vm1154, %v1289, 0.0
    %v1316 = vadd.f32 %v1314, %v1315
    %v1317 = vsel %vm1154, %v1294, 0.0
    %v1318 = vadd.f32 %v1316, %v1317
    %v1319 = vsel %vm1154, %v1299, 0.0
    %v1320 = vadd.f32 %v1318, %v1319
    %v1321 = vsel %vm1154, %v1304, 0.0
    %v1322 = vadd.f32 %v1320, %v1321
    %vm1323 = vcmask 125952
    %v1324 = vsel %vm1323, %v1309, 0.0
    %v1325 = vadd.f32 %v1322, %v1324
    %v1326 = vrot.slane %v1325, 4
    %v1327 = vadd.f32 %v1325, %v1326
    %v1328 = vrot.slane %v1327, 2
    %v1329 = vadd.f32 %v1327, %v1328
    %v1330 = vrot.slane %v1329, 1
    %v1331 = vadd.f32 %v1329, %v1330
    %v1332 = vmul.f32 %v1331, 0.01923077
    %v1333 = vsub.f32 %v1279, %v1332
    %v1334 = vsub.f32 %v1284, %v1332
    %v1335 = vsub.f32 %v1289, %v1332
    %v1336 = vsub.f32 %v1294, %v1332
    %v1337 = vsub.f32 %v1299, %v1332
    %v1338 = vsub.f32 %v1304, %v1332
    %v1339 = vsub.f32 %v1309, %v1332
    %v1340 = vmul.f32 %v1333, %v1333
    %v1341 = vmul.f32 %v1334, %v1334
    %v1342 = vmul.f32 %v1335, %v1335
    %v1343 = vmul.f32 %v1336, %v1336
    %v1344 = vmul.f32 %v1337, %v1337
    %v1345 = vmul.f32 %v1338, %v1338
    %v1346 = vmul.f32 %v1339, %v1339
    %v1347 = vsel %vm1154, %v1340, 0.0
    %v1348 = vsel %vm1154, %v1341, 0.0
    %v1349 = vadd.f32 %v1347, %v1348
    %v1350 = vsel %vm1154, %v1342, 0.0
    %v1351 = vadd.f32 %v1349, %v1350
    %v1352 = vsel %vm1154, %v1343, 0.0
    %v1353 = vadd.f32 %v1351, %v1352
    %v1354 = vsel %vm1154, %v1344, 0.0
    %v1355 = vadd.f32 %v1353, %v1354
    %v1356 = vsel %vm1154, %v1345, 0.0
    %v1357 = vadd.f32 %v1355, %v1356
    %v1358 = vsel %vm1323, %v1346, 0.0
    %v1359 = vadd.f32 %v1357, %v1358
    %v1360 = vrot.slane %v1359, 4
    %v1361 = vadd.f32 %v1359, %v1360
    %v1362 = vrot.slane %v1361, 2
    %v1363 = vadd.f32 %v1361, %v1362
    %v1364 = vrot.slane %v1363, 1
    %v1365 = vadd.f32 %v1363, %v1364
    %v1366 = vmul.f32 %v1365, 0.01923077
    %v1367 = vadd.f32 %v1366, 1e-05
    %v1368 = vrsqrt.pop %v1367
    %v1369 = vmul.f32 %v1333, %v1368
    %v1370 = vmul.f32 %v1334, %v1368
    %v1371 = vmul.f32 %v1335, %v1368
    %v1372 = vmul.f32 %v1336, %v1368
    %v1373 = vmul.f32 %v1337, %v1368
    %v1374 = vmul.f32 %v1338, %v1368
    %v1375 = vmul.f32 %v1339, %v1368
    %v1376 = vld [vmem:[%s7] sm:$0x1]
    %v1378 = vlaneseq
    %v1379 = vshrl.u32 %v1378, 7
    %v1380 = vsub.s32 0, %v1379
    %v1381 = vrot.slane %v1376, %v1380
    %v1383 = vmul.f32 %v1369, %v1381
    %v1384 = vmul.f32 %v1370, %v1381
    %v1385 = vmul.f32 %v1371, %v1381
    %v1386 = vmul.f32 %v1372, %v1381
    %v1387 = vmul.f32 %v1373, %v1381
    %v1388 = vmul.f32 %v1374, %v1381
    %v1389 = vmul.f32 %v1375, %v1381
    %v1390 = vld [vmem:[%s8] sm:$0x1]
    %v1392 = vlaneseq
    %v1393 = vshrl.u32 %v1392, 7
    %v1394 = vsub.s32 0, %v1393
    %v1395 = vrot.slane %v1390, %v1394
    %v1397 = vadd.f32 %v1383, %v1395
    %v1398 = vadd.f32 %v1384, %v1395
    %v1399 = vadd.f32 %v1385, %v1395
    %v1400 = vadd.f32 %v1386, %v1395
    %v1401 = vadd.f32 %v1387, %v1395
    %v1402 = vadd.f32 %v1388, %v1395
    %v1403 = vadd.f32 %v1389, %v1395
    %vm1404 = vcmp.gt.f32.partialorder %v1397, 0.0
    %vm1405 = vcmp.gt.f32.partialorder %v1398, 0.0
    %vm1406 = vcmp.gt.f32.partialorder %v1399, 0.0
    %vm1407 = vcmp.gt.f32.partialorder %v1400, 0.0
    %vm1408 = vcmp.gt.f32.partialorder %v1401, 0.0
    %vm1409 = vcmp.gt.f32.partialorder %v1402, 0.0
    %vm1410 = vcmp.gt.f32.partialorder %v1403, 0.0
    %v1411 = vmin.f32 %v1397, 0.0
    %v1412 = vmin.f32 %v1398, 0.0
    %v1413 = vmin.f32 %v1399, 0.0
    %v1414 = vmin.f32 %v1400, 0.0
    %v1415 = vmin.f32 %v1401, 0.0
    %v1416 = vmin.f32 %v1402, 0.0
    %v1417 = vmin.f32 %v1403, 0.0
    %v1418 = vmul.f32 %v1411, 1.442695
    %v1419 = vpow.pop %v1418
    %v1420 = vmul.f32 %v1412, 1.442695
    %v1421 = vpow.pop %v1420
    %v1422 = vmul.f32 %v1413, 1.442695
    %v1423 = vpow.pop %v1422
    %v1424 = vmul.f32 %v1414, 1.442695
    %v1425 = vpow.pop %v1424
    %v1426 = vmul.f32 %v1415, 1.442695
    %v1427 = vpow.pop %v1426
    %v1428 = vmul.f32 %v1416, 1.442695
    %v1429 = vpow.pop %v1428
    %v1430 = vmul.f32 %v1417, 1.442695
    %v1431 = vpow.pop %v1430
    %v1432 = vsub.f32 %v1419, 1.0
    %v1433 = vsub.f32 %v1421, 1.0
    %v1434 = vsub.f32 %v1423, 1.0
    %v1435 = vsub.f32 %v1425, 1.0
    %v1436 = vsub.f32 %v1427, 1.0
    %v1437 = vsub.f32 %v1429, 1.0
    %v1438 = vsub.f32 %v1431, 1.0
    %v1439 = vsel %vm1404, %v1397, %v1432
    %v1440 = vsel %vm1405, %v1398, %v1433
    %v1441 = vsel %vm1406, %v1399, %v1434
    %v1442 = vsel %vm1407, %v1400, %v1435
    %v1443 = vsel %vm1408, %v1401, %v1436
    %v1444 = vsel %vm1409, %v1402, %v1437
    %v1445 = vsel %vm1410, %v1403, %v1438
    %v1449 = vrot.slane %v1440, 5
    %v1450 = vrot.slane %v1441, 5
    %v1451 = vsel %vm1017, %v1449, %v1450
    %v1452 = vrot.slane %v1442, 5
    %v1453 = vsel %vm1017, %v1450, %v1452
    %v1457 = vrot.slane %v1442, 2
    %v1458 = vrot.slane %v1443, 2
    %v1459 = vsel %vm162, %v1457, %v1458
    %v1464 = vrot.slane %v1443, 7
    %v1465 = vrot.slane %v1444, 7
    %v1466 = vsel %vm1008, %v1464, %v1465
    %v1467 = vrot.slane %v1445, 7
    %v1468 = vsel %vm1008, %v1465, %v1467
    %v1471 = vadd.f32 %v1439, 0.0
    %v1472 = vadd.f32 %v1451, 0.0
    %v1473 = vadd.f32 %v1459, 0.0
    %v1474 = vadd.f32 %v1466, 0.0
    %v1476 = vrot.slane %v1439, 1
    %v1477 = vrot.slane %v1451, 1
    %v1478 = vrot.slane %v1459, 1
    %v1479 = vrot.slane %v1466, 1
    %v1484 = vadd.f32 %v1471, %v1476
    %v1485 = vadd.f32 %v1472, %v1477
    %v1486 = vadd.f32 %v1473, %v1478
    %v1487 = vadd.f32 %v1474, %v1479
    %v1488 = vmul.f32 %v1484, 0.5
    %v1489 = vmul.f32 %v1485, 0.5
    %v1490 = vmul.f32 %v1486, 0.5
    %v1491 = vmul.f32 %v1487, 0.5
    %v1492 = vadd.f32 %v1440, 0.0
    %v1493 = vadd.f32 %v1453, 0.0
    %v1494 = vadd.f32 %v1458, 0.0
    %v1495 = vadd.f32 %v1468, 0.0
    %v1496 = vrot.slane %v1440, 1
    %v1497 = vrot.slane %v1453, 1
    %v1498 = vrot.slane %v1458, 1
    %v1499 = vrot.slane %v1468, 1
    %v1504 = vadd.f32 %v1492, %v1496
    %v1505 = vadd.f32 %v1493, %v1497
    %v1506 = vadd.f32 %v1494, %v1498
    %v1507 = vadd.f32 %v1495, %v1499
    %v1508 = vmul.f32 %v1504, 0.5
    %v1509 = vmul.f32 %v1505, 0.5
    %v1510 = vmul.f32 %v1506, 0.5
    %v1511 = vmul.f32 %v1507, 0.5
    %v1516 = vrot.slane %v1488, 1
    %v1517 = vrot.slane %v1489, 1
    %v1518 = vrot.slane %v1490, 1
    %v1519 = vrot.slane %v1491, 1
    %v1524 = vrot.slane %v1488, 2
    %v1525 = vrot.slane %v1489, 2
    %v1526 = vrot.slane %v1490, 2
    %v1527 = vrot.slane %v1491, 2
    %v1532 = vrot.slane %v1488, 3
    %v1533 = vrot.slane %v1489, 3
    %v1534 = vrot.slane %v1490, 3
    %v1535 = vrot.slane %v1491, 3
    %v1544 = vrot.slane %v1508, 4
    %v1545 = vrot.slane %v1509, 4
    %v1546 = vrot.slane %v1510, 4
    %v1547 = vrot.slane %v1511, 4
    %v1552 = vrot.slane %v1508, 5
    %v1553 = vrot.slane %v1509, 5
    %v1554 = vrot.slane %v1510, 5
    %v1555 = vrot.slane %v1511, 5
    %v1560 = vsel %vm1008, %v1488, %v1516
    %v1561 = vsel %vm1008, %v1489, %v1517
    %v1562 = vsel %vm1008, %v1490, %v1518
    %v1563 = vsel %vm1008, %v1491, %v1519
    %v1564 = vsel %vm304, %v1560, %v1524
    %v1565 = vsel %vm304, %v1561, %v1525
    %v1566 = vsel %vm304, %v1562, %v1526
    %v1567 = vsel %vm304, %v1563, %v1527
    %v1568 = vsel %vm1017, %v1564, %v1532
    %v1569 = vsel %vm1017, %v1565, %v1533
    %v1570 = vsel %vm1017, %v1566, %v1534
    %v1571 = vsel %vm1017, %v1567, %v1535
    %v1572 = vsel %vm290, %v1568, %v1544
    %v1573 = vsel %vm290, %v1569, %v1545
    %v1574 = vsel %vm290, %v1570, %v1546
    %v1575 = vsel %vm290, %v1571, %v1547
    %v1576 = vsel %vm1026, %v1572, %v1552
    %v1577 = vsel %vm1026, %v1573, %v1553
    %v1578 = vsel %vm1026, %v1574, %v1554
    %v1579 = vsel %vm1026, %v1575, %v1555
    %v1580 = vld [vmem:[%s9] sm:$0xff]
    %v1581 = vld [vmem:[%s9 + $0x8] sm:$0xff]
    %v1582 = vld [vmem:[%s9 + $0x10] sm:$0xff]
    %v1583 = vld [vmem:[%s9 + $0x18] sm:$0xff]
    %v1584 = vld [vmem:[%s9 + $0x20] sm:$0xff]
    %v1585 = vld [vmem:[%s9 + $0x28] sm:$0xff]
    %v1590 = vrot.slane %v1576, 1
    %v1591 = vrot.slane %v1577, 1
    %v1592 = vrot.slane %v1578, 1
    %v1593 = vrot.slane %v1579, 1
    %1594 = vrot.lane.b32.xlu0 %v1590, 16
    %v1595 = vpop.permute.xlu0 %1594
    %1596 = vrot.lane.b32.xlu0 %v1591, 16
    %v1597 = vpop.permute.xlu0 %1596
    %1598 = vrot.lane.b32.xlu0 %v1592, 16
    %v1599 = vpop.permute.xlu0 %1598
    %1600 = vrot.lane.b32.xlu0 %v1593, 16
    %v1601 = vpop.permute.xlu0 %1600
    %v1606 = vrot.slane %v1576, 2
    %v1607 = vrot.slane %v1577, 2
    %v1608 = vrot.slane %v1578, 2
    %v1609 = vrot.slane %v1579, 2
    %1610 = vrot.lane.b32.xlu0 %v1606, 32
    %v1611 = vpop.permute.xlu0 %1610
    %1612 = vrot.lane.b32.xlu0 %v1607, 32
    %v1613 = vpop.permute.xlu0 %1612
    %1614 = vrot.lane.b32.xlu0 %v1608, 32
    %v1615 = vpop.permute.xlu0 %1614
    %1616 = vrot.lane.b32.xlu0 %v1609, 32
    %v1617 = vpop.permute.xlu0 %1616
    %v1622 = vsel %vm1154, %v1576, %v1595
    %v1623 = vsel %vm1154, %v1577, %v1597
    %v1624 = vsel %vm1154, %v1578, %v1599
    %v1625 = vsel %vm1154, %v1579, %v1601
    %vm1626 = vcmask 261120
    %v1627 = vsel %vm1626, %v1622, %v1611
    %v1628 = vsel %vm1626, %v1623, %v1613
    %v1629 = vsel %vm1626, %v1624, %v1615
    %v1630 = vsel %vm1626, %v1625, %v1617
    %v1632 = vrot.slane %v1628, 4
    %v1635 = vrot.slane %v1630, 4
    %v1637 = vsel %vm290, %v1627, %v1632
    %v1638 = vsel %vm290, %v1629, %v1635
    %v1639 = vld [vmem:[%s10] sm:$0x1]
    %v1641 = vlaneseq
    %v1642 = vshrl.u32 %v1641, 7
    %v1643 = vsub.s32 0, %v1642
    %v1644 = vrot.slane %v1639, %v1643
    %vm1646 = vcmask 392192
    %v1648 = vsel %vm1646, %v1637, 0
    %v1651 = vsel %vm1646, %v1638, 0
    %1653 = vmatprep.subr.mxu0 0.0
    %1654 = vmatpush1.msra.mxu0 %v1580
    %1655 = vmatprep.subr.mxu0 0.0
    %1656 = vmatpush1.msra.mxu0 %v1581
    %1657 = vmatprep.subr.mxu0 0.0
    %1658 = vmatpush1.msra.mxu0 %v1582
    %1659 = vmatprep.subr.mxu0 0.0
    %1660 = vmatpush1.msra.mxu0 %v1583
    %1661 = vmatprep.subr.mxu0 0.0
    %1662 = vmatpush1.msra.mxu0 %v1584
    %1663 = vmatprep.subr.mxu0 0.0
    %1664 = vmatpush1.msra.mxu0 %v1585
    %1665 = vmatprep.subr.mxu0 0.0
    %1666 = vmatpush1.msra.mxu0 0.0
    %1667 = vmatprep.subr.mxu0 0.0
    %1668 = vmatpush1.msra.mxu0 0.0
    %1669 = vmatprep.subr.mxu0 0.0
    %1670 = vmatpush1.msra.mxu0 0.0
    %1671 = vmatprep.subr.mxu0 0.0
    %1672 = vmatpush1.msra.mxu0 0.0
    %1673 = vmatprep.subr.mxu0 0.0
    %1674 = vmatpush1.msra.mxu0 0.0
    %1675 = vmatprep.subr.mxu0 0.0
    %1676 = vmatpush1.msra.mxu0 0.0
    %1677 = vmatprep.subr.mxu0 0.0
    %1678 = vmatpush1.msra.mxu0 0.0
    %1679 = vmatprep.subr.mxu0 0.0
    %1680 = vmatpush1.msra.mxu0 0.0
    %1681 = vmatprep.subr.mxu0 0.0
    %1682 = vmatpush1.msra.mxu0 0.0
    %1683 = vmatprep.subr.mxu0 0.0
    %1684 = vmatpush1.msra.mxu0 0.0
    %1685 = vmatprep.subr.mxu0 0.0
    %1686 = vmatpush1.msra.mxu0 0.0
    %1687 = vmatprep.subr.mxu0 0.0
    %1688 = vmatpush1.msra.mxu0 0.0
    %1689 = vmatprep.subr.mxu0 0.0
    %1690 = vmatpush1.msra.mxu0 0.0
    %1691 = vmatprep.subr.mxu0 0.0
    %1692 = vmatpush1.msra.mxu0 0.0
    %1693 = vmatprep.subr.mxu0 0.0
    %1694 = vmatpush1.msra.mxu0 0.0
    %1695 = vmatprep.subr.mxu0 0.0
    %1696 = vmatpush1.msra.mxu0 0.0
    %1697 = vmatprep.subr.mxu0 0.0
    %1698 = vmatpush1.msra.mxu0 0.0
    %1699 = vmatprep.subr.mxu0 0.0
    %1700 = vmatpush1.msra.mxu0 0.0
    %1701 = vmatprep.subr.mxu0 0.0
    %1702 = vmatpush1.msra.mxu0 0.0
    %1703 = vmatprep.subr.mxu0 0.0
    %1704 = vmatpush1.msra.mxu0 0.0
    %1705 = vmatprep.subr.mxu0 0.0
    %1706 = vmatpush1.msra.mxu0 0.0
    %1707 = vmatprep.subr.mxu0 0.0
    %1708 = vmatpush1.msra.mxu0 0.0
    %1709 = vmatprep.subr.mxu0 0.0
    %1710 = vmatpush1.msra.mxu0 0.0
    %1711 = vmatprep.subr.mxu0 0.0
    %1712 = vmatpush1.msra.mxu0 0.0
    %1713 = vmatprep.subr.mxu0 0.0
    %1714 = vmatpush1.msra.mxu0 0.0
    %1715 = vmatprep.subr.mxu0 0.0
    %1716 = vmatpush1.msra.mxu0 0.0
    %1717 = vmatprep.mubr.f32.mxu0 0.0
    %1718 = vmatmul.mubr.f32.gmra.mrb[0].mxu0 %v1648
    %v1719 = vpop.f32.mrb[0].mxu0
    %v1720 = vadd.f32 %v1644, %v1719
    %v1721 = vpop.f32.mrb[0].mxu0
    %1722 = vmatprep.mubr.f32.mxu0 0.0
    %1723 = vmatmul.mubr.f32.gmra.mrb[0].mxu0 %v1651
    %v1724 = vpop.f32.mrb[0].mxu0
    %v1725 = vadd.f32 %v1644, %v1724
    %v1726 = vpop.f32.mrb[0].mxu0
    %1727 = vdwg.mxu0
    %v1728 = vsel %vm1626, %v1720, 0.0
    %v1729 = vsel %vm1626, %v1725, 0.0
    %v1730 = vadd.f32 %v1728, %v1729
    %v1731 = vrot.slane %v1730, 4
    %v1732 = vadd.f32 %v1730, %v1731
    %v1733 = vrot.slane %v1732, 2
    %v1734 = vadd.f32 %v1732, %v1733
    %v1735 = vrot.slane %v1734, 1
    %v1736 = vadd.f32 %v1734, %v1735
    %v1737 = vmul.f32 %v1736, 0.0625
    %v1738 = vsub.f32 %v1720, %v1737
    %v1739 = vsub.f32 %v1725, %v1737
    %v1740 = vmul.f32 %v1738, %v1738
    %v1741 = vmul.f32 %v1739, %v1739
    %v1742 = vsel %vm1626, %v1740, 0.0
    %v1743 = vsel %vm1626, %v1741, 0.0
    %v1744 = vadd.f32 %v1742, %v1743
    %v1745 = vrot.slane %v1744, 4
    %v1746 = vadd.f32 %v1744, %v1745
    %v1747 = vrot.slane %v1746, 2
    %v1748 = vadd.f32 %v1746, %v1747
    %v1749 = vrot.slane %v1748, 1
    %v1750 = vadd.f32 %v1748, %v1749
    %v1751 = vmul.f32 %v1750, 0.0625
    %v1752 = vadd.f32 %v1751, 1e-05
    %v1753 = vrsqrt.pop %v1752
    %v1754 = vmul.f32 %v1738, %v1753
    %v1755 = vmul.f32 %v1739, %v1753
    %v1756 = vld [vmem:[%s11] sm:$0x1]
    %v1758 = vlaneseq
    %v1759 = vshrl.u32 %v1758, 7
    %v1760 = vsub.s32 0, %v1759
    %v1761 = vrot.slane %v1756, %v1760
    %v1763 = vmul.f32 %v1754, %v1761
    %v1764 = vmul.f32 %v1755, %v1761
    %v1765 = vld [vmem:[%s12] sm:$0x1]
    %v1767 = vlaneseq
    %v1768 = vshrl.u32 %v1767, 7
    %v1769 = vsub.s32 0, %v1768
    %v1770 = vrot.slane %v1765, %v1769
    %v1772 = vadd.f32 %v1763, %v1770
    %v1773 = vadd.f32 %v1764, %v1770
    %vm1774 = vcmp.gt.f32.partialorder %v1772, 0.0
    %vm1775 = vcmp.gt.f32.partialorder %v1773, 0.0
    %v1776 = vmin.f32 %v1772, 0.0
    %v1777 = vmin.f32 %v1773, 0.0
    %v1778 = vmul.f32 %v1776, 1.442695
    %v1779 = vpow.pop %v1778
    %v1780 = vmul.f32 %v1777, 1.442695
    %v1781 = vpow.pop %v1780
    %v1782 = vsub.f32 %v1779, 1.0
    %v1783 = vsub.f32 %v1781, 1.0
    %v1784 = vsel %vm1774, %v1772, %v1782
    %v1785 = vsel %vm1775, %v1773, %v1783
    %v1787 = vrot.slane %v1784, 4
    %v1790 = vrot.slane %v1785, 4
    %v1792 = vadd.f32 %v1784, 0.0
    %v1793 = vadd.f32 %v1787, 0.0
    %v1794 = vadd.f32 %v1785, 0.0
    %v1795 = vadd.f32 %v1790, 0.0
    %v1796 = vrot.slane %v1784, 1
    %v1797 = vrot.slane %v1787, 1
    %v1798 = vrot.slane %v1785, 1
    %v1799 = vrot.slane %v1790, 1
    %v1804 = vadd.f32 %v1792, %v1796
    %v1805 = vadd.f32 %v1793, %v1797
    %v1806 = vadd.f32 %v1794, %v1798
    %v1807 = vadd.f32 %v1795, %v1799
    %v1808 = vmul.f32 %v1804, 0.5
    %v1809 = vmul.f32 %v1805, 0.5
    %v1810 = vmul.f32 %v1806, 0.5
    %v1811 = vmul.f32 %v1807, 0.5
    %v1816 = vrot.slane %v1808, 1
    %v1817 = vrot.slane %v1809, 1
    %v1818 = vrot.slane %v1810, 1
    %v1819 = vrot.slane %v1811, 1
    %v1824 = vsel %vm1008, %v1808, %v1816
    %v1825 = vsel %vm1008, %v1809, %v1817
    %v1826 = vsel %vm1008, %v1810, %v1818
    %v1827 = vsel %vm1008, %v1811, %v1819
    %v1830 = vrot.slane %v1825, 7
    %vm1831 = vcmask 1041409
    %v1832 = vsel %vm1831, %v1830, %v1824
    %v1834 = vrot.slane %v1824, 1
    %v1835 = vsel %vm1831, %v1825, %v1834
    %1836 = vrot.lane.b32.xlu0 %v1835, 32
    %v1837 = vpop.permute.xlu0 %1836
    %v1841 = vrot.slane %v1827, 7
    %v1842 = vsel %vm1831, %v1841, %v1826
    %1843 = vrot.lane.b32.xlu0 %v1842, 64
    %v1844 = vpop.permute.xlu0 %1843
    %v1846 = vrot.slane %v1826, 1
    %v1847 = vsel %vm1831, %v1827, %v1846
    %1848 = vrot.lane.b32.xlu0 %v1847, 96
    %v1849 = vpop.permute.xlu0 %1848
    %v1851 = vsel %vm1626, %v1832, %v1837
    %vm1852 = vcmask 523264
    %v1853 = vsel %vm1852, %v1851, %v1844
    %vm1854 = vcmask 785408
    %v1855 = vsel %vm1854, %v1853, %v1849
    %v1856 = vld [vmem:[%s13] sm:$0xff]
    %v1857 = vld [vmem:[%s13 + $0x8] sm:$0xff]
    %v1858 = vld [vmem:[%s13 + $0x10] sm:$0xff]
    %v1859 = vld [vmem:[%s13 + $0x18] sm:$0xff]
    %v1860 = vld [vmem:[%s13 + $0x20] sm:$0xff]
    %v1861 = vld [vmem:[%s13 + $0x28] sm:$0xff]
    %v1862 = vld [vmem:[%s13 + $0x30] sm:$0xff]
    %v1863 = vld [vmem:[%s13 + $0x38] sm:$0xff]
    %v1864 = vld [vmem:[%s13 + $0x40] sm:$0xff]
    %v1865 = vld [vmem:[%s13 + $0x48] sm:$0xff]
    %v1866 = vld [vmem:[%s13 + $0x50] sm:$0xff]
    %v1867 = vld [vmem:[%s13 + $0x58] sm:$0xff]
    %v1868 = vld [vmem:[%s13 + $0x60] sm:$0xff]
    %v1869 = vld [vmem:[%s13 + $0x68] sm:$0xff]
    %v1870 = vld [vmem:[%s13 + $0x70] sm:$0xff]
    %v1871 = vld [vmem:[%s13 + $0x78] sm:$0xff]
    %v1872 = vld [vmem:[%s14] sm:$0x1]
    %v1874 = vlaneseq
    %v1875 = vshrl.u32 %v1874, 7
    %v1876 = vsub.s32 0, %v1875
    %v1877 = vrot.slane %v1872, %v1876
    %1879 = vmatprep.subr.mxu0 0.0
    %1880 = vmatpush1.msra.mxu0 %v1856
    %1881 = vmatprep.subr.mxu0 0.0
    %1882 = vmatpush1.msra.mxu0 %v1857
    %1883 = vmatprep.subr.mxu0 0.0
    %1884 = vmatpush1.msra.mxu0 %v1858
    %1885 = vmatprep.subr.mxu0 0.0
    %1886 = vmatpush1.msra.mxu0 %v1859
    %1887 = vmatprep.subr.mxu0 0.0
    %1888 = vmatpush1.msra.mxu0 %v1860
    %1889 = vmatprep.subr.mxu0 0.0
    %1890 = vmatpush1.msra.mxu0 %v1861
    %1891 = vmatprep.subr.mxu0 0.0
    %1892 = vmatpush1.msra.mxu0 %v1862
    %1893 = vmatprep.subr.mxu0 0.0
    %1894 = vmatpush1.msra.mxu0 %v1863
    %1895 = vmatprep.subr.mxu0 0.0
    %1896 = vmatpush1.msra.mxu0 %v1864
    %1897 = vmatprep.subr.mxu0 0.0
    %1898 = vmatpush1.msra.mxu0 %v1865
    %1899 = vmatprep.subr.mxu0 0.0
    %1900 = vmatpush1.msra.mxu0 %v1866
    %1901 = vmatprep.subr.mxu0 0.0
    %1902 = vmatpush1.msra.mxu0 %v1867
    %1903 = vmatprep.subr.mxu0 0.0
    %1904 = vmatpush1.msra.mxu0 %v1868
    %1905 = vmatprep.subr.mxu0 0.0
    %1906 = vmatpush1.msra.mxu0 %v1869
    %1907 = vmatprep.subr.mxu0 0.0
    %1908 = vmatpush1.msra.mxu0 %v1870
    %1909 = vmatprep.subr.mxu0 0.0
    %1910 = vmatpush1.msra.mxu0 %v1871
    %1911 = vmatprep.subr.mxu0 0.0
    %1912 = vmatpush1.msra.mxu0 0.0
    %1913 = vmatprep.subr.mxu0 0.0
    %1914 = vmatpush1.msra.mxu0 0.0
    %1915 = vmatprep.subr.mxu0 0.0
    %1916 = vmatpush1.msra.mxu0 0.0
    %1917 = vmatprep.subr.mxu0 0.0
    %1918 = vmatpush1.msra.mxu0 0.0
    %1919 = vmatprep.subr.mxu0 0.0
    %1920 = vmatpush1.msra.mxu0 0.0
    %1921 = vmatprep.subr.mxu0 0.0
    %1922 = vmatpush1.msra.mxu0 0.0
    %1923 = vmatprep.subr.mxu0 0.0
    %1924 = vmatpush1.msra.mxu0 0.0
    %1925 = vmatprep.subr.mxu0 0.0
    %1926 = vmatpush1.msra.mxu0 0.0
    %1927 = vmatprep.subr.mxu0 0.0
    %1928 = vmatpush1.msra.mxu0 0.0
    %1929 = vmatprep.subr.mxu0 0.0
    %1930 = vmatpush1.msra.mxu0 0.0
    %1931 = vmatprep.subr.mxu0 0.0
    %1932 = vmatpush1.msra.mxu0 0.0
    %1933 = vmatprep.subr.mxu0 0.0
    %1934 = vmatpush1.msra.mxu0 0.0
    %1935 = vmatprep.subr.mxu0 0.0
    %1936 = vmatpush1.msra.mxu0 0.0
    %1937 = vmatprep.subr.mxu0 0.0
    %1938 = vmatpush1.msra.mxu0 0.0
    %1939 = vmatprep.subr.mxu0 0.0
    %1940 = vmatpush1.msra.mxu0 0.0
    %1941 = vmatprep.subr.mxu0 0.0
    %1942 = vmatpush1.msra.mxu0 0.0
    %1943 = vmatprep.mubr.f32.mxu0 0.0
    %1944 = vmatmul.mubr.f32.gmra.mrb[0].mxu0 %v1855
    %v1945 = vpop.f32.mrb[0].mxu0
    %v1946 = vadd.f32 %v1877, %v1945
    %v1947 = vpop.f32.mrb[0].mxu0
    %1948 = vdwg.mxu0
    %1949 = vst [vmem:[#allocation2] sm:$0x3] %v1946
    // Predicated region
    $region62: #{_arm_forward.1} parent=1 // pred_check
      _
    $region63: #{_arm_forward.1} parent=1 // pred_check_branch
      %1951 = sbr.rel (0) target = $region65
    $region64: #{_arm_forward.1} parent=1 // pred_region
      %s1953 = ssub.s32 32, 32
      %1954 = vsyncadd [#allocation3], %s1953
      %s1956 = sshll.u32 [#allocation2], 4
      %s1957 = int_to_ptr.vmem [resolvable:$true] %s1956
      %1959 = dma.vmem_to_hbm [thread:$0]  %s1957, 32, %s15, [#allocation3]
    $region65: #{_arm_forward.1} parent=1 // pred_fallthru
      _
    // Predicated region
    $region66: #{_arm_forward.1} parent=1 // pred_check
      _
    $region67: #{_arm_forward.1} parent=1 // pred_check_branch
      %1961 = sbr.rel (0) target = $region69
    $region68: #{_arm_forward.1} parent=1 // pred_region
      %1962 = dma.done [#allocation3], 32
    $region69: #{_arm_forward.1} parent=1 // pred_fallthru
      _
    %1963 = vsyncpa [#allocation3], 1

</llo_original>
